<compile_context>
chip_gen: v7x
topology: tpu7x:2x2x1
jax: 0.10.0
libtpu: 0.0.40
codegen_flags: <defaults>
</compile_context>

<pallas_src>
import functools

import jax
import jax.numpy as jnp
import numpy as np
from jax.experimental import pallas as pl
from jax.experimental.pallas import tpu as pltpu


def _lstm_step(pre, c, H):
    """One LSTM cell update from a (1, 4H) fused pre-activation.

    Gate order (i, f, g, o) as in PyTorch.  Uses ONE sigmoid pass over the
    whole fused row (i, f, o read as lane slices of the result) and a single
    tanh on the g chunk, minimizing EUP pushes on the recurrent chain."""
    sig = jax.nn.sigmoid(pre)                     # one EUP pass over (1, 4H)
    i = sig[:, 0 * H:1 * H]
    f = sig[:, 1 * H:2 * H]
    o = sig[:, 3 * H:4 * H]
    g = jnp.tanh(pre[:, 2 * H:3 * H])             # single tanh on g chunk
    c_new = f * c + i * g
    h_new = o * jnp.tanh(c_new)
    return h_new, c_new


def decoder_kernel(x_ref,
                   wih1_ref, whh1_ref, b1_ref,
                   wih2_ref, whh2_ref, b2_ref,
                   wout_ref, bout_ref,
                   out_ref,
                   *, seq_len, input_dim, hidden_dim):
    H1, H2 = input_dim, hidden_dim

    # ---------------- layer 1: LSTM(input_dim -> input_dim) ----------------
    # The input row is identical every timestep -> hoist the input projection.
    x = x_ref[...]                                                    # (1, D)
    xproj1 = (jnp.dot(x, wih1_ref[...], preferred_element_type=jnp.float32)
              + b1_ref[...])                                          # (1, 4*H1)
    whh1 = whh1_ref[...]

    h1 = jnp.zeros((1, H1), jnp.float32)
    c1 = jnp.zeros((1, H1), jnp.float32)
    h1_rows = []
    for t in range(seq_len):                     # fully unrolled (static)
        pre = xproj1 + jnp.dot(h1, whh1, preferred_element_type=jnp.float32)
        h1, c1 = _lstm_step(pre, c1, H1)
        h1_rows.append(h1)
    h1_all = jnp.concatenate(h1_rows, axis=0)                         # (S, H1)

    # ---------------- layer 2: LSTM(input_dim -> hidden_dim) ---------------
    # Batched input projection for the whole sequence; only W_hh stays serial.
    xproj2 = (jnp.dot(h1_all, wih2_ref[...], preferred_element_type=jnp.float32)
              + b2_ref[...])                                          # (S, 4*H2)
    # Pre-extract per-step rows so the extracts sit off the h2 critical path.
    xrows2 = [xproj2[t:t + 1, :] for t in range(seq_len)]
    whh2 = whh2_ref[...]

    h2 = jnp.zeros((1, H2), jnp.float32)
    c2 = jnp.zeros((1, H2), jnp.float32)
    h2_rows = []
    for t in range(seq_len):                     # fully unrolled (static)
        pre = xrows2[t] + jnp.dot(h2, whh2, preferred_element_type=jnp.float32)
        h2, c2 = _lstm_step(pre, c2, H2)
        h2_rows.append(h2)
    h2_all = jnp.concatenate(h2_rows, axis=0)                         # (S, H2)

    # ---------------- output layer: Linear(hidden_dim -> n_features) -------
    out_ref[...] = (jnp.dot(h2_all, wout_ref[...],
                            preferred_element_type=jnp.float32)
                    + bout_ref[...])                                  # (S, F)


def decoder_forward(x, params, seq_len, input_dim, n_features):
    assert n_features == 1, "module's repeat/reshape trick assumes n_features == 1"
    hidden_dim = 2 * input_dim

    kernel = functools.partial(decoder_kernel,
                               seq_len=seq_len,
                               input_dim=input_dim,
                               hidden_dim=hidden_dim)

    # Everything is tiny (a few hundred KiB) -> no grid / BlockSpec tiling;
    # whole arrays resident in VMEM, single kernel invocation, no scratch.
    out = pl.pallas_call(
        kernel,
        out_shape=jax.ShapeDtypeStruct((seq_len, n_features), jnp.float32),
    )(x,
      params["wih1"], params["whh1"], params["b1"],
      params["wih2"], params["whh2"], params["b2"],
      params["wout"], params["bout"])
    return out


def init_params(key, input_dim, n_features):
    """Deterministic synthetic params, PyTorch-style uniform(-1/sqrt(H), 1/sqrt(H)).

    Gate-fused layout: W_ih/W_hh are (D, 4H) and biases (1, 4H), gate order
    (i, f, g, o); bias is the combined b_ih + b_hh."""
    hidden_dim = 2 * input_dim
    ks = jax.random.split(key, 8)

    def u(k, shape, hsz):
        s = 1.0 / float(np.sqrt(hsz))
        return jax.random.uniform(k, shape, jnp.float32, -s, s)

    return {
        # rnn1: LSTM(input_dim -> input_dim)
        "wih1": u(ks[0], (input_dim, 4 * input_dim), input_dim),
        "whh1": u(ks[1], (input_dim, 4 * input_dim), input_dim),
        "b1":   u(ks[2], (1, 4 * input_dim), input_dim),
        # rnn2: LSTM(input_dim -> hidden_dim)
        "wih2": u(ks[3], (input_dim, 4 * hidden_dim), hidden_dim),
        "whh2": u(ks[4], (hidden_dim, 4 * hidden_dim), hidden_dim),
        "b2":   u(ks[5], (1, 4 * hidden_dim), hidden_dim),
        # output_layer: Linear(hidden_dim -> n_features)
        "wout": u(ks[6], (hidden_dim, n_features), hidden_dim),
        "bout": u(ks[7], (1, n_features), hidden_dim),
    }


def decoder_reference(x, params, seq_len, input_dim, n_features):
    """Pure-JAX reference of the same math (for correctness check)."""
    # x.repeat(seq_len, n_features).reshape((n_features, seq_len, input_dim))
    xs = jnp.tile(x, (seq_len, n_features)).reshape(
        (n_features, seq_len, input_dim))[0]

    def run_lstm(xs, wih, whh, b, H):
        def step(carry, x_t):
            h, c = carry
            pre = x_t @ wih + h @ whh + b[0]
            i = jax.nn.sigmoid(pre[0 * H:1 * H])
            f = jax.nn.sigmoid(pre[1 * H:2 * H])
            g = jnp.tanh(pre[2 * H:3 * H])
            o = jax.nn.sigmoid(pre[3 * H:4 * H])
            c = f * c + i * g
            h = o * jnp.tanh(c)
            return (h, c), h
        init = (jnp.zeros((H,), jnp.float32), jnp.zeros((H,), jnp.float32))
        _, ys = jax.lax.scan(step, init, xs)
        return ys

    h1 = run_lstm(xs, params["wih1"], params["whh1"], params["b1"], input_dim)
    h2 = run_lstm(h1, params["wih2"], params["whh2"], params["b2"],
                  2 * input_dim)
    return h2 @ params["wout"] + params["bout"][0]


if __name__ == "__main__":
    seq_len, input_dim, n_features = 8, 32, 1

    key = jax.random.PRNGKey(0)
    kx, kp = jax.random.split(key)
    # Decoder input: encoder latent of shape (n_features, input_dim) == (1, 32)
    x = jax.random.normal(kx, (n_features, input_dim), jnp.float32)
    params = init_params(kp, input_dim, n_features)

    out = decoder_forward(x, params, seq_len, input_dim, n_features)
    out = jax.block_until_ready(out)
    assert out.shape == (seq_len, n_features)

    ref = decoder_reference(x, params, seq_len, input_dim, n_features)
    np.testing.assert_allclose(np.asarray(out), np.asarray(ref),
                               rtol=1e-4, atol=1e-4)
    print("KERNEL_OK")
</pallas_src>

<mosaic_0001>
module attributes {stable_mosaic.version = 11 : i64} {
  func.func @decoder_kernel(%arg0: memref<1x32xf32, #tpu.memory_space<vmem>>, %arg1: memref<32x128xf32, #tpu.memory_space<vmem>>, %arg2: memref<32x128xf32, #tpu.memory_space<vmem>>, %arg3: memref<1x128xf32, #tpu.memory_space<vmem>>, %arg4: memref<32x256xf32, #tpu.memory_space<vmem>>, %arg5: memref<64x256xf32, #tpu.memory_space<vmem>>, %arg6: memref<1x256xf32, #tpu.memory_space<vmem>>, %arg7: memref<64x1xf32, #tpu.memory_space<vmem>>, %arg8: memref<1x1xf32, #tpu.memory_space<vmem>>, %arg9: memref<8x1xf32, #tpu.memory_space<vmem>>) attributes {dimension_semantics = [], scalar_prefetch = 0 : i64, scratch_operands = 0 : i64, tpu.core_type = #tpu.core_type<tc>} {
    %c0 = arith.constant 0 : index
    %c0_0 = arith.constant 0 : index
    %0 = vector.load %arg0[%c0, %c0_0] : memref<1x32xf32, #tpu.memory_space<vmem>>, vector<1x32xf32>
    %c0_1 = arith.constant 0 : index
    %c0_2 = arith.constant 0 : index
    %1 = vector.load %arg1[%c0_1, %c0_2] : memref<32x128xf32, #tpu.memory_space<vmem>>, vector<32x128xf32>
    %cst = arith.constant dense<0.000000e+00> : vector<1x128xf32>
    %2 = tpu.matmul %0, %1, %cst {dimension_numbers = #tpu.dot_dimension_numbers<[1], [0], [0], [1], [0, 0, 1, 1], [], []>} : vector<1x32xf32>, vector<32x128xf32>, vector<1x128xf32> -> vector<1x128xf32>
    %c0_3 = arith.constant 0 : index
    %c0_4 = arith.constant 0 : index
    %3 = vector.load %arg3[%c0_3, %c0_4] : memref<1x128xf32, #tpu.memory_space<vmem>>, vector<1x128xf32>
    %4 = arith.addf %2, %3 : vector<1x128xf32>
    %c0_5 = arith.constant 0 : index
    %c0_6 = arith.constant 0 : index
    %5 = vector.load %arg2[%c0_5, %c0_6] : memref<32x128xf32, #tpu.memory_space<vmem>>, vector<32x128xf32>
    %cst_7 = arith.constant 0.000000e+00 : f32
    %6 = vector.broadcast %cst_7 : f32 to vector<1x32xf32>
    %cst_8 = arith.constant 0.000000e+00 : f32
    %7 = vector.broadcast %cst_8 : f32 to vector<1x32xf32>
    %cst_9 = arith.constant dense<0.000000e+00> : vector<1x128xf32>
    %8 = tpu.matmul %6, %5, %cst_9 {dimension_numbers = #tpu.dot_dimension_numbers<[1], [0], [0], [1], [0, 0, 1, 1], [], []>} : vector<1x32xf32>, vector<32x128xf32>, vector<1x128xf32> -> vector<1x128xf32>
    %9 = arith.addf %4, %8 : vector<1x128xf32>
    %10 = arith.negf %9 : vector<1x128xf32>
    %11 = math.exp %10 : vector<1x128xf32>
    %cst_10 = arith.constant 1.000000e+00 : f32
    %12 = vector.broadcast %cst_10 : f32 to vector<1x128xf32>
    %13 = arith.addf %12, %11 : vector<1x128xf32>
    %14 = arith.divf %12, %13 : vector<1x128xf32>
    %15 = vector.extract_strided_slice %14 {offsets = [0, 0], sizes = [1, 32], strides = [1, 1]} : vector<1x128xf32> to vector<1x32xf32>
    %16 = vector.extract_strided_slice %14 {offsets = [0, 32], sizes = [1, 32], strides = [1, 1]} : vector<1x128xf32> to vector<1x32xf32>
    %17 = vector.extract_strided_slice %14 {offsets = [0, 96], sizes = [1, 32], strides = [1, 1]} : vector<1x128xf32> to vector<1x32xf32>
    %18 = vector.extract_strided_slice %9 {offsets = [0, 64], sizes = [1, 32], strides = [1, 1]} : vector<1x128xf32> to vector<1x32xf32>
    %19 = math.tanh %18 : vector<1x32xf32>
    %20 = arith.mulf %16, %7 : vector<1x32xf32>
    %21 = arith.mulf %15, %19 : vector<1x32xf32>
    %22 = arith.addf %20, %21 : vector<1x32xf32>
    %23 = math.tanh %22 : vector<1x32xf32>
    %24 = arith.mulf %17, %23 : vector<1x32xf32>
    %cst_11 = arith.constant dense<0.000000e+00> : vector<1x128xf32>
    %25 = tpu.matmul %24, %5, %cst_11 {dimension_numbers = #tpu.dot_dimension_numbers<[1], [0], [0], [1], [0, 0, 1, 1], [], []>} : vector<1x32xf32>, vector<32x128xf32>, vector<1x128xf32> -> vector<1x128xf32>
    %26 = arith.addf %4, %25 : vector<1x128xf32>
    %27 = arith.negf %26 : vector<1x128xf32>
    %28 = math.exp %27 : vector<1x128xf32>
    %cst_12 = arith.constant 1.000000e+00 : f32
    %29 = vector.broadcast %cst_12 : f32 to vector<1x128xf32>
    %30 = arith.addf %29, %28 : vector<1x128xf32>
    %31 = arith.divf %29, %30 : vector<1x128xf32>
    %32 = vector.extract_strided_slice %31 {offsets = [0, 0], sizes = [1, 32], strides = [1, 1]} : vector<1x128xf32> to vector<1x32xf32>
    %33 = vector.extract_strided_slice %31 {offsets = [0, 32], sizes = [1, 32], strides = [1, 1]} : vector<1x128xf32> to vector<1x32xf32>
    %34 = vector.extract_strided_slice %31 {offsets = [0, 96], sizes = [1, 32], strides = [1, 1]} : vector<1x128xf32> to vector<1x32xf32>
    %35 = vector.extract_strided_slice %26 {offsets = [0, 64], sizes = [1, 32], strides = [1, 1]} : vector<1x128xf32> to vector<1x32xf32>
    %36 = math.tanh %35 : vector<1x32xf32>
    %37 = arith.mulf %33, %22 : vector<1x32xf32>
    %38 = arith.mulf %32, %36 : vector<1x32xf32>
    %39 = arith.addf %37, %38 : vector<1x32xf32>
    %40 = math.tanh %39 : vector<1x32xf32>
    %41 = arith.mulf %34, %40 : vector<1x32xf32>
    %cst_13 = arith.constant dense<0.000000e+00> : vector<1x128xf32>
    %42 = tpu.matmul %41, %5, %cst_13 {dimension_numbers = #tpu.dot_dimension_numbers<[1], [0], [0], [1], [0, 0, 1, 1], [], []>} : vector<1x32xf32>, vector<32x128xf32>, vector<1x128xf32> -> vector<1x128xf32>
    %43 = arith.addf %4, %42 : vector<1x128xf32>
    %44 = arith.negf %43 : vector<1x128xf32>
    %45 = math.exp %44 : vector<1x128xf32>
    %cst_14 = arith.constant 1.000000e+00 : f32
    %46 = vector.broadcast %cst_14 : f32 to vector<1x128xf32>
    %47 = arith.addf %46, %45 : vector<1x128xf32>
    %48 = arith.divf %46, %47 : vector<1x128xf32>
    %49 = vector.extract_strided_slice %48 {offsets = [0, 0], sizes = [1, 32], strides = [1, 1]} : vector<1x128xf32> to vector<1x32xf32>
    %50 = vector.extract_strided_slice %48 {offsets = [0, 32], sizes = [1, 32], strides = [1, 1]} : vector<1x128xf32> to vector<1x32xf32>
    %51 = vector.extract_strided_slice %48 {offsets = [0, 96], sizes = [1, 32], strides = [1, 1]} : vector<1x128xf32> to vector<1x32xf32>
    %52 = vector.extract_strided_slice %43 {offsets = [0, 64], sizes = [1, 32], strides = [1, 1]} : vector<1x128xf32> to vector<1x32xf32>
    %53 = math.tanh %52 : vector<1x32xf32>
    %54 = arith.mulf %50, %39 : vector<1x32xf32>
    %55 = arith.mulf %49, %53 : vector<1x32xf32>
    %56 = arith.addf %54, %55 : vector<1x32xf32>
    %57 = math.tanh %56 : vector<1x32xf32>
    %58 = arith.mulf %51, %57 : vector<1x32xf32>
    %cst_15 = arith.constant dense<0.000000e+00> : vector<1x128xf32>
    %59 = tpu.matmul %58, %5, %cst_15 {dimension_numbers = #tpu.dot_dimension_numbers<[1], [0], [0], [1], [0, 0, 1, 1], [], []>} : vector<1x32xf32>, vector<32x128xf32>, vector<1x128xf32> -> vector<1x128xf32>
    %60 = arith.addf %4, %59 : vector<1x128xf32>
    %61 = arith.negf %60 : vector<1x128xf32>
    %62 = math.exp %61 : vector<1x128xf32>
    %cst_16 = arith.constant 1.000000e+00 : f32
    %63 = vector.broadcast %cst_16 : f32 to vector<1x128xf32>
    %64 = arith.addf %63, %62 : vector<1x128xf32>
    %65 = arith.divf %63, %64 : vector<1x128xf32>
    %66 = vector.extract_strided_slice %65 {offsets = [0, 0], sizes = [1, 32], strides = [1, 1]} : vector<1x128xf32> to vector<1x32xf32>
    %67 = vector.extract_strided_slice %65 {offsets = [0, 32], sizes = [1, 32], strides = [1, 1]} : vector<1x128xf32> to vector<1x32xf32>
    %68 = vector.extract_strided_slice %65 {offsets = [0, 96], sizes = [1, 32], strides = [1, 1]} : vector<1x128xf32> to vector<1x32xf32>
    %69 = vector.extract_strided_slice %60 {offsets = [0, 64], sizes = [1, 32], strides = [1, 1]} : vector<1x128xf32> to vector<1x32xf32>
    %70 = math.tanh %69 : vector<1x32xf32>
    %71 = arith.mulf %67, %56 : vector<1x32xf32>
    %72 = arith.mulf %66, %70 : vector<1x32xf32>
    %73 = arith.addf %71, %72 : vector<1x32xf32>
    %74 = math.tanh %73 : vector<1x32xf32>
    %75 = arith.mulf %68, %74 : vector<1x32xf32>
    %cst_17 = arith.constant dense<0.000000e+00> : vector<1x128xf32>
    %76 = tpu.matmul %75, %5, %cst_17 {dimension_numbers = #tpu.dot_dimension_numbers<[1], [0], [0], [1], [0, 0, 1, 1], [], []>} : vector<1x32xf32>, vector<32x128xf32>, vector<1x128xf32> -> vector<1x128xf32>
    %77 = arith.addf %4, %76 : vector<1x128xf32>
    %78 = arith.negf %77 : vector<1x128xf32>
    %79 = math.exp %78 : vector<1x128xf32>
    %cst_18 = arith.constant 1.000000e+00 : f32
    %80 = vector.broadcast %cst_18 : f32 to vector<1x128xf32>
    %81 = arith.addf %80, %79 : vector<1x128xf32>
    %82 = arith.divf %80, %81 : vector<1x128xf32>
    %83 = vector.extract_strided_slice %82 {offsets = [0, 0], sizes = [1, 32], strides = [1, 1]} : vector<1x128xf32> to vector<1x32xf32>
    %84 = vector.extract_strided_slice %82 {offsets = [0, 32], sizes = [1, 32], strides = [1, 1]} : vector<1x128xf32> to vector<1x32xf32>
    %85 = vector.extract_strided_slice %82 {offsets = [0, 96], sizes = [1, 32], strides = [1, 1]} : vector<1x128xf32> to vector<1x32xf32>
    %86 = vector.extract_strided_slice %77 {offsets = [0, 64], sizes = [1, 32], strides = [1, 1]} : vector<1x128xf32> to vector<1x32xf32>
    %87 = math.tanh %86 : vector<1x32xf32>
    %88 = arith.mulf %84, %73 : vector<1x32xf32>
    %89 = arith.mulf %83, %87 : vector<1x32xf32>
    %90 = arith.addf %88, %89 : vector<1x32xf32>
    %91 = math.tanh %90 : vector<1x32xf32>
    %92 = arith.mulf %85, %91 : vector<1x32xf32>
    %cst_19 = arith.constant dense<0.000000e+00> : vector<1x128xf32>
    %93 = tpu.matmul %92, %5, %cst_19 {dimension_numbers = #tpu.dot_dimension_numbers<[1], [0], [0], [1], [0, 0, 1, 1], [], []>} : vector<1x32xf32>, vector<32x128xf32>, vector<1x128xf32> -> vector<1x128xf32>
    %94 = arith.addf %4, %93 : vector<1x128xf32>
    %95 = arith.negf %94 : vector<1x128xf32>
    %96 = math.exp %95 : vector<1x128xf32>
    %cst_20 = arith.constant 1.000000e+00 : f32
    %97 = vector.broadcast %cst_20 : f32 to vector<1x128xf32>
    %98 = arith.addf %97, %96 : vector<1x128xf32>
    %99 = arith.divf %97, %98 : vector<1x128xf32>
    %100 = vector.extract_strided_slice %99 {offsets = [0, 0], sizes = [1, 32], strides = [1, 1]} : vector<1x128xf32> to vector<1x32xf32>
    %101 = vector.extract_strided_slice %99 {offsets = [0, 32], sizes = [1, 32], strides = [1, 1]} : vector<1x128xf32> to vector<1x32xf32>
    %102 = vector.extract_strided_slice %99 {offsets = [0, 96], sizes = [1, 32], strides = [1, 1]} : vector<1x128xf32> to vector<1x32xf32>
    %103 = vector.extract_strided_slice %94 {offsets = [0, 64], sizes = [1, 32], strides = [1, 1]} : vector<1x128xf32> to vector<1x32xf32>
    %104 = math.tanh %103 : vector<1x32xf32>
    %105 = arith.mulf %101, %90 : vector<1x32xf32>
    %106 = arith.mulf %100, %104 : vector<1x32xf32>
    %107 = arith.addf %105, %106 : vector<1x32xf32>
    %108 = math.tanh %107 : vector<1x32xf32>
    %109 = arith.mulf %102, %108 : vector<1x32xf32>
    %cst_21 = arith.constant dense<0.000000e+00> : vector<1x128xf32>
    %110 = tpu.matmul %109, %5, %cst_21 {dimension_numbers = #tpu.dot_dimension_numbers<[1], [0], [0], [1], [0, 0, 1, 1], [], []>} : vector<1x32xf32>, vector<32x128xf32>, vector<1x128xf32> -> vector<1x128xf32>
    %111 = arith.addf %4, %110 : vector<1x128xf32>
    %112 = arith.negf %111 : vector<1x128xf32>
    %113 = math.exp %112 : vector<1x128xf32>
    %cst_22 = arith.constant 1.000000e+00 : f32
    %114 = vector.broadcast %cst_22 : f32 to vector<1x128xf32>
    %115 = arith.addf %114, %113 : vector<1x128xf32>
    %116 = arith.divf %114, %115 : vector<1x128xf32>
    %117 = vector.extract_strided_slice %116 {offsets = [0, 0], sizes = [1, 32], strides = [1, 1]} : vector<1x128xf32> to vector<1x32xf32>
    %118 = vector.extract_strided_slice %116 {offsets = [0, 32], sizes = [1, 32], strides = [1, 1]} : vector<1x128xf32> to vector<1x32xf32>
    %119 = vector.extract_strided_slice %116 {offsets = [0, 96], sizes = [1, 32], strides = [1, 1]} : vector<1x128xf32> to vector<1x32xf32>
    %120 = vector.extract_strided_slice %111 {offsets = [0, 64], sizes = [1, 32], strides = [1, 1]} : vector<1x128xf32> to vector<1x32xf32>
    %121 = math.tanh %120 : vector<1x32xf32>
    %122 = arith.mulf %118, %107 : vector<1x32xf32>
    %123 = arith.mulf %117, %121 : vector<1x32xf32>
    %124 = arith.addf %122, %123 : vector<1x32xf32>
    %125 = math.tanh %124 : vector<1x32xf32>
    %126 = arith.mulf %119, %125 : vector<1x32xf32>
    %cst_23 = arith.constant dense<0.000000e+00> : vector<1x128xf32>
    %127 = tpu.matmul %126, %5, %cst_23 {dimension_numbers = #tpu.dot_dimension_numbers<[1], [0], [0], [1], [0, 0, 1, 1], [], []>} : vector<1x32xf32>, vector<32x128xf32>, vector<1x128xf32> -> vector<1x128xf32>
    %128 = arith.addf %4, %127 : vector<1x128xf32>
    %129 = arith.negf %128 : vector<1x128xf32>
    %130 = math.exp %129 : vector<1x128xf32>
    %cst_24 = arith.constant 1.000000e+00 : f32
    %131 = vector.broadcast %cst_24 : f32 to vector<1x128xf32>
    %132 = arith.addf %131, %130 : vector<1x128xf32>
    %133 = arith.divf %131, %132 : vector<1x128xf32>
    %134 = vector.extract_strided_slice %133 {offsets = [0, 0], sizes = [1, 32], strides = [1, 1]} : vector<1x128xf32> to vector<1x32xf32>
    %135 = vector.extract_strided_slice %133 {offsets = [0, 32], sizes = [1, 32], strides = [1, 1]} : vector<1x128xf32> to vector<1x32xf32>
    %136 = vector.extract_strided_slice %133 {offsets = [0, 96], sizes = [1, 32], strides = [1, 1]} : vector<1x128xf32> to vector<1x32xf32>
    %137 = vector.extract_strided_slice %128 {offsets = [0, 64], sizes = [1, 32], strides = [1, 1]} : vector<1x128xf32> to vector<1x32xf32>
    %138 = math.tanh %137 : vector<1x32xf32>
    %139 = arith.mulf %135, %124 : vector<1x32xf32>
    %140 = arith.mulf %134, %138 : vector<1x32xf32>
    %141 = arith.addf %139, %140 : vector<1x32xf32>
    %142 = math.tanh %141 : vector<1x32xf32>
    %143 = arith.mulf %136, %142 : vector<1x32xf32>
    %144 = tpu.concatenate %24, %41, %58, %75, %92, %109, %126, %143 in 0 : vector<1x32xf32>, vector<1x32xf32>, vector<1x32xf32>, vector<1x32xf32>, vector<1x32xf32>, vector<1x32xf32>, vector<1x32xf32>, vector<1x32xf32> -> vector<8x32xf32>
    %c0_25 = arith.constant 0 : index
    %c0_26 = arith.constant 0 : index
    %145 = vector.load %arg4[%c0_25, %c0_26] : memref<32x256xf32, #tpu.memory_space<vmem>>, vector<32x256xf32>
    %cst_27 = arith.constant dense<0.000000e+00> : vector<8x256xf32>
    %146 = tpu.matmul %144, %145, %cst_27 {dimension_numbers = #tpu.dot_dimension_numbers<[1], [0], [0], [1], [0, 0, 1, 1], [], []>} : vector<8x32xf32>, vector<32x256xf32>, vector<8x256xf32> -> vector<8x256xf32>
    %c0_28 = arith.constant 0 : index
    %c0_29 = arith.constant 0 : index
    %147 = vector.load %arg6[%c0_28, %c0_29] : memref<1x256xf32, #tpu.memory_space<vmem>>, vector<1x256xf32>
    %148 = vector.broadcast %147 : vector<1x256xf32> to vector<8x256xf32>
    %149 = arith.addf %146, %148 : vector<8x256xf32>
    %150 = vector.extract_strided_slice %149 {offsets = [0, 0], sizes = [1, 256], strides = [1, 1]} : vector<8x256xf32> to vector<1x256xf32>
    %151 = vector.extract_strided_slice %149 {offsets = [1, 0], sizes = [1, 256], strides = [1, 1]} : vector<8x256xf32> to vector<1x256xf32>
    %152 = vector.extract_strided_slice %149 {offsets = [2, 0], sizes = [1, 256], strides = [1, 1]} : vector<8x256xf32> to vector<1x256xf32>
    %153 = vector.extract_strided_slice %149 {offsets = [3, 0], sizes = [1, 256], strides = [1, 1]} : vector<8x256xf32> to vector<1x256xf32>
    %154 = vector.extract_strided_slice %149 {offsets = [4, 0], sizes = [1, 256], strides = [1, 1]} : vector<8x256xf32> to vector<1x256xf32>
    %155 = vector.extract_strided_slice %149 {offsets = [5, 0], sizes = [1, 256], strides = [1, 1]} : vector<8x256xf32> to vector<1x256xf32>
    %156 = vector.extract_strided_slice %149 {offsets = [6, 0], sizes = [1, 256], strides = [1, 1]} : vector<8x256xf32> to vector<1x256xf32>
    %157 = vector.extract_strided_slice %149 {offsets = [7, 0], sizes = [1, 256], strides = [1, 1]} : vector<8x256xf32> to vector<1x256xf32>
    %c0_30 = arith.constant 0 : index
    %c0_31 = arith.constant 0 : index
    %158 = vector.load %arg5[%c0_30, %c0_31] : memref<64x256xf32, #tpu.memory_space<vmem>>, vector<64x256xf32>
    %cst_32 = arith.constant 0.000000e+00 : f32
    %159 = vector.broadcast %cst_32 : f32 to vector<1x64xf32>
    %cst_33 = arith.constant 0.000000e+00 : f32
    %160 = vector.broadcast %cst_33 : f32 to vector<1x64xf32>
    %cst_34 = arith.constant dense<0.000000e+00> : vector<1x256xf32>
    %161 = tpu.matmul %159, %158, %cst_34 {dimension_numbers = #tpu.dot_dimension_numbers<[1], [0], [0], [1], [0, 0, 1, 1], [], []>} : vector<1x64xf32>, vector<64x256xf32>, vector<1x256xf32> -> vector<1x256xf32>
    %162 = arith.addf %150, %161 : vector<1x256xf32>
    %163 = arith.negf %162 : vector<1x256xf32>
    %164 = math.exp %163 : vector<1x256xf32>
    %cst_35 = arith.constant 1.000000e+00 : f32
    %165 = vector.broadcast %cst_35 : f32 to vector<1x256xf32>
    %166 = arith.addf %165, %164 : vector<1x256xf32>
    %167 = arith.divf %165, %166 : vector<1x256xf32>
    %168 = vector.extract_strided_slice %167 {offsets = [0, 0], sizes = [1, 64], strides = [1, 1]} : vector<1x256xf32> to vector<1x64xf32>
    %169 = vector.extract_strided_slice %167 {offsets = [0, 64], sizes = [1, 64], strides = [1, 1]} : vector<1x256xf32> to vector<1x64xf32>
    %170 = vector.extract_strided_slice %167 {offsets = [0, 192], sizes = [1, 64], strides = [1, 1]} : vector<1x256xf32> to vector<1x64xf32>
    %171 = vector.extract_strided_slice %162 {offsets = [0, 128], sizes = [1, 64], strides = [1, 1]} : vector<1x256xf32> to vector<1x64xf32>
    %172 = math.tanh %171 : vector<1x64xf32>
    %173 = arith.mulf %169, %160 : vector<1x64xf32>
    %174 = arith.mulf %168, %172 : vector<1x64xf32>
    %175 = arith.addf %173, %174 : vector<1x64xf32>
    %176 = math.tanh %175 : vector<1x64xf32>
    %177 = arith.mulf %170, %176 : vector<1x64xf32>
    %cst_36 = arith.constant dense<0.000000e+00> : vector<1x256xf32>
    %178 = tpu.matmul %177, %158, %cst_36 {dimension_numbers = #tpu.dot_dimension_numbers<[1], [0], [0], [1], [0, 0, 1, 1], [], []>} : vector<1x64xf32>, vector<64x256xf32>, vector<1x256xf32> -> vector<1x256xf32>
    %179 = arith.addf %151, %178 : vector<1x256xf32>
    %180 = arith.negf %179 : vector<1x256xf32>
    %181 = math.exp %180 : vector<1x256xf32>
    %cst_37 = arith.constant 1.000000e+00 : f32
    %182 = vector.broadcast %cst_37 : f32 to vector<1x256xf32>
    %183 = arith.addf %182, %181 : vector<1x256xf32>
    %184 = arith.divf %182, %183 : vector<1x256xf32>
    %185 = vector.extract_strided_slice %184 {offsets = [0, 0], sizes = [1, 64], strides = [1, 1]} : vector<1x256xf32> to vector<1x64xf32>
    %186 = vector.extract_strided_slice %184 {offsets = [0, 64], sizes = [1, 64], strides = [1, 1]} : vector<1x256xf32> to vector<1x64xf32>
    %187 = vector.extract_strided_slice %184 {offsets = [0, 192], sizes = [1, 64], strides = [1, 1]} : vector<1x256xf32> to vector<1x64xf32>
    %188 = vector.extract_strided_slice %179 {offsets = [0, 128], sizes = [1, 64], strides = [1, 1]} : vector<1x256xf32> to vector<1x64xf32>
    %189 = math.tanh %188 : vector<1x64xf32>
    %190 = arith.mulf %186, %175 : vector<1x64xf32>
    %191 = arith.mulf %185, %189 : vector<1x64xf32>
    %192 = arith.addf %190, %191 : vector<1x64xf32>
    %193 = math.tanh %192 : vector<1x64xf32>
    %194 = arith.mulf %187, %193 : vector<1x64xf32>
    %cst_38 = arith.constant dense<0.000000e+00> : vector<1x256xf32>
    %195 = tpu.matmul %194, %158, %cst_38 {dimension_numbers = #tpu.dot_dimension_numbers<[1], [0], [0], [1], [0, 0, 1, 1], [], []>} : vector<1x64xf32>, vector<64x256xf32>, vector<1x256xf32> -> vector<1x256xf32>
    %196 = arith.addf %152, %195 : vector<1x256xf32>
    %197 = arith.negf %196 : vector<1x256xf32>
    %198 = math.exp %197 : vector<1x256xf32>
    %cst_39 = arith.constant 1.000000e+00 : f32
    %199 = vector.broadcast %cst_39 : f32 to vector<1x256xf32>
    %200 = arith.addf %199, %198 : vector<1x256xf32>
    %201 = arith.divf %199, %200 : vector<1x256xf32>
    %202 = vector.extract_strided_slice %201 {offsets = [0, 0], sizes = [1, 64], strides = [1, 1]} : vector<1x256xf32> to vector<1x64xf32>
    %203 = vector.extract_strided_slice %201 {offsets = [0, 64], sizes = [1, 64], strides = [1, 1]} : vector<1x256xf32> to vector<1x64xf32>
    %204 = vector.extract_strided_slice %201 {offsets = [0, 192], sizes = [1, 64], strides = [1, 1]} : vector<1x256xf32> to vector<1x64xf32>
    %205 = vector.extract_strided_slice %196 {offsets = [0, 128], sizes = [1, 64], strides = [1, 1]} : vector<1x256xf32> to vector<1x64xf32>
    %206 = math.tanh %205 : vector<1x64xf32>
    %207 = arith.mulf %203, %192 : vector<1x64xf32>
    %208 = arith.mulf %202, %206 : vector<1x64xf32>
    %209 = arith.addf %207, %208 : vector<1x64xf32>
    %210 = math.tanh %209 : vector<1x64xf32>
    %211 = arith.mulf %204, %210 : vector<1x64xf32>
    %cst_40 = arith.constant dense<0.000000e+00> : vector<1x256xf32>
    %212 = tpu.matmul %211, %158, %cst_40 {dimension_numbers = #tpu.dot_dimension_numbers<[1], [0], [0], [1], [0, 0, 1, 1], [], []>} : vector<1x64xf32>, vector<64x256xf32>, vector<1x256xf32> -> vector<1x256xf32>
    %213 = arith.addf %153, %212 : vector<1x256xf32>
    %214 = arith.negf %213 : vector<1x256xf32>
    %215 = math.exp %214 : vector<1x256xf32>
    %cst_41 = arith.constant 1.000000e+00 : f32
    %216 = vector.broadcast %cst_41 : f32 to vector<1x256xf32>
    %217 = arith.addf %216, %215 : vector<1x256xf32>
    %218 = arith.divf %216, %217 : vector<1x256xf32>
    %219 = vector.extract_strided_slice %218 {offsets = [0, 0], sizes = [1, 64], strides = [1, 1]} : vector<1x256xf32> to vector<1x64xf32>
    %220 = vector.extract_strided_slice %218 {offsets = [0, 64], sizes = [1, 64], strides = [1, 1]} : vector<1x256xf32> to vector<1x64xf32>
    %221 = vector.extract_strided_slice %218 {offsets = [0, 192], sizes = [1, 64], strides = [1, 1]} : vector<1x256xf32> to vector<1x64xf32>
    %222 = vector.extract_strided_slice %213 {offsets = [0, 128], sizes = [1, 64], strides = [1, 1]} : vector<1x256xf32> to vector<1x64xf32>
    %223 = math.tanh %222 : vector<1x64xf32>
    %224 = arith.mulf %220, %209 : vector<1x64xf32>
    %225 = arith.mulf %219, %223 : vector<1x64xf32>
    %226 = arith.addf %224, %225 : vector<1x64xf32>
    %227 = math.tanh %226 : vector<1x64xf32>
    %228 = arith.mulf %221, %227 : vector<1x64xf32>
    %cst_42 = arith.constant dense<0.000000e+00> : vector<1x256xf32>
    %229 = tpu.matmul %228, %158, %cst_42 {dimension_numbers = #tpu.dot_dimension_numbers<[1], [0], [0], [1], [0, 0, 1, 1], [], []>} : vector<1x64xf32>, vector<64x256xf32>, vector<1x256xf32> -> vector<1x256xf32>
    %230 = arith.addf %154, %229 : vector<1x256xf32>
    %231 = arith.negf %230 : vector<1x256xf32>
    %232 = math.exp %231 : vector<1x256xf32>
    %cst_43 = arith.constant 1.000000e+00 : f32
    %233 = vector.broadcast %cst_43 : f32 to vector<1x256xf32>
    %234 = arith.addf %233, %232 : vector<1x256xf32>
    %235 = arith.divf %233, %234 : vector<1x256xf32>
    %236 = vector.extract_strided_slice %235 {offsets = [0, 0], sizes = [1, 64], strides = [1, 1]} : vector<1x256xf32> to vector<1x64xf32>
    %237 = vector.extract_strided_slice %235 {offsets = [0, 64], sizes = [1, 64], strides = [1, 1]} : vector<1x256xf32> to vector<1x64xf32>
    %238 = vector.extract_strided_slice %235 {offsets = [0, 192], sizes = [1, 64], strides = [1, 1]} : vector<1x256xf32> to vector<1x64xf32>
    %239 = vector.extract_strided_slice %230 {offsets = [0, 128], sizes = [1, 64], strides = [1, 1]} : vector<1x256xf32> to vector<1x64xf32>
    %240 = math.tanh %239 : vector<1x64xf32>
    %241 = arith.mulf %237, %226 : vector<1x64xf32>
    %242 = arith.mulf %236, %240 : vector<1x64xf32>
    %243 = arith.addf %241, %242 : vector<1x64xf32>
    %244 = math.tanh %243 : vector<1x64xf32>
    %245 = arith.mulf %238, %244 : vector<1x64xf32>
    %cst_44 = arith.constant dense<0.000000e+00> : vector<1x256xf32>
    %246 = tpu.matmul %245, %158, %cst_44 {dimension_numbers = #tpu.dot_dimension_numbers<[1], [0], [0], [1], [0, 0, 1, 1], [], []>} : vector<1x64xf32>, vector<64x256xf32>, vector<1x256xf32> -> vector<1x256xf32>
    %247 = arith.addf %155, %246 : vector<1x256xf32>
    %248 = arith.negf %247 : vector<1x256xf32>
    %249 = math.exp %248 : vector<1x256xf32>
    %cst_45 = arith.constant 1.000000e+00 : f32
    %250 = vector.broadcast %cst_45 : f32 to vector<1x256xf32>
    %251 = arith.addf %250, %249 : vector<1x256xf32>
    %252 = arith.divf %250, %251 : vector<1x256xf32>
    %253 = vector.extract_strided_slice %252 {offsets = [0, 0], sizes = [1, 64], strides = [1, 1]} : vector<1x256xf32> to vector<1x64xf32>
    %254 = vector.extract_strided_slice %252 {offsets = [0, 64], sizes = [1, 64], strides = [1, 1]} : vector<1x256xf32> to vector<1x64xf32>
    %255 = vector.extract_strided_slice %252 {offsets = [0, 192], sizes = [1, 64], strides = [1, 1]} : vector<1x256xf32> to vector<1x64xf32>
    %256 = vector.extract_strided_slice %247 {offsets = [0, 128], sizes = [1, 64], strides = [1, 1]} : vector<1x256xf32> to vector<1x64xf32>
    %257 = math.tanh %256 : vector<1x64xf32>
    %258 = arith.mulf %254, %243 : vector<1x64xf32>
    %259 = arith.mulf %253, %257 : vector<1x64xf32>
    %260 = arith.addf %258, %259 : vector<1x64xf32>
    %261 = math.tanh %260 : vector<1x64xf32>
    %262 = arith.mulf %255, %261 : vector<1x64xf32>
    %cst_46 = arith.constant dense<0.000000e+00> : vector<1x256xf32>
    %263 = tpu.matmul %262, %158, %cst_46 {dimension_numbers = #tpu.dot_dimension_numbers<[1], [0], [0], [1], [0, 0, 1, 1], [], []>} : vector<1x64xf32>, vector<64x256xf32>, vector<1x256xf32> -> vector<1x256xf32>
    %264 = arith.addf %156, %263 : vector<1x256xf32>
    %265 = arith.negf %264 : vector<1x256xf32>
    %266 = math.exp %265 : vector<1x256xf32>
    %cst_47 = arith.constant 1.000000e+00 : f32
    %267 = vector.broadcast %cst_47 : f32 to vector<1x256xf32>
    %268 = arith.addf %267, %266 : vector<1x256xf32>
    %269 = arith.divf %267, %268 : vector<1x256xf32>
    %270 = vector.extract_strided_slice %269 {offsets = [0, 0], sizes = [1, 64], strides = [1, 1]} : vector<1x256xf32> to vector<1x64xf32>
    %271 = vector.extract_strided_slice %269 {offsets = [0, 64], sizes = [1, 64], strides = [1, 1]} : vector<1x256xf32> to vector<1x64xf32>
    %272 = vector.extract_strided_slice %269 {offsets = [0, 192], sizes = [1, 64], strides = [1, 1]} : vector<1x256xf32> to vector<1x64xf32>
    %273 = vector.extract_strided_slice %264 {offsets = [0, 128], sizes = [1, 64], strides = [1, 1]} : vector<1x256xf32> to vector<1x64xf32>
    %274 = math.tanh %273 : vector<1x64xf32>
    %275 = arith.mulf %271, %260 : vector<1x64xf32>
    %276 = arith.mulf %270, %274 : vector<1x64xf32>
    %277 = arith.addf %275, %276 : vector<1x64xf32>
    %278 = math.tanh %277 : vector<1x64xf32>
    %279 = arith.mulf %272, %278 : vector<1x64xf32>
    %cst_48 = arith.constant dense<0.000000e+00> : vector<1x256xf32>
    %280 = tpu.matmul %279, %158, %cst_48 {dimension_numbers = #tpu.dot_dimension_numbers<[1], [0], [0], [1], [0, 0, 1, 1], [], []>} : vector<1x64xf32>, vector<64x256xf32>, vector<1x256xf32> -> vector<1x256xf32>
    %281 = arith.addf %157, %280 : vector<1x256xf32>
    %282 = arith.negf %281 : vector<1x256xf32>
    %283 = math.exp %282 : vector<1x256xf32>
    %cst_49 = arith.constant 1.000000e+00 : f32
    %284 = vector.broadcast %cst_49 : f32 to vector<1x256xf32>
    %285 = arith.addf %284, %283 : vector<1x256xf32>
    %286 = arith.divf %284, %285 : vector<1x256xf32>
    %287 = vector.extract_strided_slice %286 {offsets = [0, 0], sizes = [1, 64], strides = [1, 1]} : vector<1x256xf32> to vector<1x64xf32>
    %288 = vector.extract_strided_slice %286 {offsets = [0, 64], sizes = [1, 64], strides = [1, 1]} : vector<1x256xf32> to vector<1x64xf32>
    %289 = vector.extract_strided_slice %286 {offsets = [0, 192], sizes = [1, 64], strides = [1, 1]} : vector<1x256xf32> to vector<1x64xf32>
    %290 = vector.extract_strided_slice %281 {offsets = [0, 128], sizes = [1, 64], strides = [1, 1]} : vector<1x256xf32> to vector<1x64xf32>
    %291 = math.tanh %290 : vector<1x64xf32>
    %292 = arith.mulf %288, %277 : vector<1x64xf32>
    %293 = arith.mulf %287, %291 : vector<1x64xf32>
    %294 = arith.addf %292, %293 : vector<1x64xf32>
    %295 = math.tanh %294 : vector<1x64xf32>
    %296 = arith.mulf %289, %295 : vector<1x64xf32>
    %297 = tpu.concatenate %177, %194, %211, %228, %245, %262, %279, %296 in 0 : vector<1x64xf32>, vector<1x64xf32>, vector<1x64xf32>, vector<1x64xf32>, vector<1x64xf32>, vector<1x64xf32>, vector<1x64xf32>, vector<1x64xf32> -> vector<8x64xf32>
    %c0_50 = arith.constant 0 : index
    %c0_51 = arith.constant 0 : index
    %298 = vector.load %arg7[%c0_50, %c0_51] : memref<64x1xf32, #tpu.memory_space<vmem>>, vector<64x1xf32>
    %cst_52 = arith.constant dense<0.000000e+00> : vector<8x1xf32>
    %299 = tpu.matmul %297, %298, %cst_52 {dimension_numbers = #tpu.dot_dimension_numbers<[1], [0], [0], [1], [0, 0, 1, 1], [], []>} : vector<8x64xf32>, vector<64x1xf32>, vector<8x1xf32> -> vector<8x1xf32>
    %c0_53 = arith.constant 0 : index
    %c0_54 = arith.constant 0 : index
    %300 = vector.load %arg8[%c0_53, %c0_54] : memref<1x1xf32, #tpu.memory_space<vmem>>, vector<1x1xf32>
    %301 = vector.broadcast %300 : vector<1x1xf32> to vector<8x1xf32>
    %302 = arith.addf %299, %301 : vector<8x1xf32>
    %c0_55 = arith.constant 0 : index
    %c0_56 = arith.constant 0 : index
    %303 = vector.load %arg9[%c0_55, %c0_56] : memref<8x1xf32, #tpu.memory_space<vmem>>, vector<8x1xf32>
    tpu.vector_store %arg9[%c0_55, %c0_56], %302 {strides = array<i32>} : memref<8x1xf32, #tpu.memory_space<vmem>>, vector<8x1xf32>,
    return
  }
}

</mosaic_0001>

<llo_original>
// kernel: tpu_custom_call.1
$region0: #{tpu_custom_call.1}
  #allocation0 [shape = 'u32[]', space=smem, size = 0x4, offset = 0x4, fixed_abs, tag = 'smem constant byte address 0x4 - core index']
  #allocation1 [shape = 'u32[144,128]{1,0:T(1,128)}', space=vmem, size = 0x12000, scoped, tag = 'internal scratch']
  #allocation2 [shape = 'f32[1,1]{1,0:T(1,128)S(1)}', space=vmem, size = 0x200, scoped, tag = 'scoped memory for tpu_custom_call.1']
  %s0 = inlined_call_operand.vmem [shape: f32[1,32], index: 0, kind: input, shape index: {}]
  %s1 = inlined_call_operand.hbm [shape: f32[32,128], index: 1, kind: input, shape index: {}]
  %s2 = inlined_call_operand.hbm [shape: f32[32,128], index: 2, kind: input, shape index: {}]
  %s3 = inlined_call_operand.vmem [shape: f32[1,128], index: 3, kind: input, shape index: {}]
  %s4 = inlined_call_operand.vmem [shape: f32[32,256], index: 4, kind: input, shape index: {}]
  %s5 = inlined_call_operand.hbm [shape: f32[64,256], index: 5, kind: input, shape index: {}]
  %s6 = inlined_call_operand.vmem [shape: f32[1,256], index: 6, kind: input, shape index: {}]
  %s7 = inlined_call_operand.vmem [shape: f32[64,1], index: 7, kind: input, shape index: {}]
  %s8 = inlined_call_operand.<no memory space> [shape: f32[1,1], index: 8, kind: input, shape index: {}]
  %s9 = inlined_call_operand.vmem [shape: f32[8,1], index: 9, kind: output, shape index: {}]
  %s10 = sld [smem:[#allocation0]]
  $region58: #{tpu_custom_call.1} parent=0
    _
  %s12 = ssub.s32 1, %s10
  %s13 = scalar_select 0, %s12, %s10
  %v14 = vstv %s8
  %15 = vst [vmem:[#allocation2] sm:$0x1] %v14
  $region1: #{tpu_custom_call.1} parent=0
    #allocation3 [shape = 'u8[16384]{0}', space=vmem, size = 0x4000, scoped, tag = 'input window, operand 1, single buffered']
    #allocation4 [shape = 's32[1]{0}', space=sflag, size = 0x4, scoped, tag = 'scoped memory for tpu_custom_call.1']
    #allocation5 [shape = 'u8[16384]{0}', space=vmem, size = 0x4000, scoped, tag = 'input window, operand 2, single buffered']
    #allocation6 [shape = 's32[1]{0}', space=sflag, size = 0x4, scoped, tag = 'scoped memory for tpu_custom_call.1']
    #allocation7 [shape = 'u8[65536]{0}', space=vmem, size = 0x10000, scoped, tag = 'input window, operand 5, single buffered']
    %16 = vsyncpa [#allocation4], 0
    %17 = vsyncpa [#allocation6], 0
    // Predicated region
    $region2: #{tpu_custom_call.1} parent=1 // pred_check
      _
    $region3: #{tpu_custom_call.1} parent=1 // pred_check_branch
      %19 = sbr.rel (0) target = $region5
    $region4: #{tpu_custom_call.1} parent=1 // pred_region
      _
    $region5: #{tpu_custom_call.1} parent=1 // pred_fallthru
      _
    // Predicated region
    $region6: #{tpu_custom_call.1} parent=1 // pred_check
      _
    $region7: #{tpu_custom_call.1} parent=1 // pred_check_branch
      %21 = sbr.rel (0) target = $region9
    $region8: #{tpu_custom_call.1} parent=1 // pred_region
      %s23 = ssub.s32 512, 512
      %24 = vsyncadd [#allocation4], %s23
      %s25 = sshll.u32 [#allocation3], 4
      %s26 = int_to_ptr.vmem [resolvable:$true] %s25
      %31 = dma.hbm_to_vmem [thread:$0]  %s1, 512, %s26, [#allocation4], 128, 128, 8
    $region9: #{tpu_custom_call.1} parent=1 // pred_fallthru
      _
    // Predicated region
    $region10: #{tpu_custom_call.1} parent=1 // pred_check
      _
    $region11: #{tpu_custom_call.1} parent=1 // pred_check_branch
      %33 = sbr.rel (0) target = $region13
    $region12: #{tpu_custom_call.1} parent=1 // pred_region
      %s35 = ssub.s32 512, 512
      %36 = vsyncadd [#allocation6], %s35
      %s37 = sshll.u32 [#allocation5], 4
      %s38 = int_to_ptr.vmem [resolvable:$true] %s37
      %43 = dma.hbm_to_vmem [thread:$0]  %s2, 512, %s38, [#allocation6], 128, 128, 8
    $region13: #{tpu_custom_call.1} parent=1 // pred_fallthru
      _
    // Predicated region
    $region14: #{tpu_custom_call.1} parent=1 // pred_check
      _
    $region15: #{tpu_custom_call.1} parent=1 // pred_check_branch
      %45 = sbr.rel (0) target = $region17
    $region16: #{tpu_custom_call.1} parent=1 // pred_region
      _
    $region17: #{tpu_custom_call.1} parent=1 // pred_fallthru
      _
    // Predicated region
    $region18: #{tpu_custom_call.1} parent=1 // pred_check
      _
    $region19: #{tpu_custom_call.1} parent=1 // pred_check_branch
      %47 = sbr.rel (0) target = $region21
    $region20: #{tpu_custom_call.1} parent=1 // pred_region
      _
    $region21: #{tpu_custom_call.1} parent=1 // pred_fallthru
      _
    // Predicated region
    $region22: #{tpu_custom_call.1} parent=1 // pred_check
      _
    $region23: #{tpu_custom_call.1} parent=1 // pred_check_branch
      %49 = sbr.rel (0) target = $region25
    $region24: #{tpu_custom_call.1} parent=1 // pred_region
      %s51 = ssub.s32 2048, 2048
      %52 = vsyncadd [#allocation6], %s51
      %s53 = sshll.u32 [#allocation7], 4
      %s54 = int_to_ptr.vmem [resolvable:$true] %s53
      %59 = dma.hbm_to_vmem [thread:$0]  %s5, 2048, %s54, [#allocation6], 256, 256, 16
    $region25: #{tpu_custom_call.1} parent=1 // pred_fallthru
      _
    // Predicated region
    $region26: #{tpu_custom_call.1} parent=1 // pred_check
      _
    $region27: #{tpu_custom_call.1} parent=1 // pred_check_branch
      %61 = sbr.rel (0) target = $region29
    $region28: #{tpu_custom_call.1} parent=1 // pred_region
      _
    $region29: #{tpu_custom_call.1} parent=1 // pred_fallthru
      _
    // Predicated region
    $region30: #{tpu_custom_call.1} parent=1 // pred_check
      _
    $region31: #{tpu_custom_call.1} parent=1 // pred_check_branch
      %63 = sbr.rel (0) target = $region33
    $region32: #{tpu_custom_call.1} parent=1 // pred_region
      _
    $region33: #{tpu_custom_call.1} parent=1 // pred_fallthru
      _
    // Predicated region
    $region34: #{tpu_custom_call.1} parent=1 // pred_check
      _
    $region35: #{tpu_custom_call.1} parent=1 // pred_check_branch
      %65 = sbr.rel (0) target = $region37
    $region36: #{tpu_custom_call.1} parent=1 // pred_region
      _
    $region37: #{tpu_custom_call.1} parent=1 // pred_fallthru
      _
    // Predicated region
    $region38: #{tpu_custom_call.1} parent=1 // pred_check
      _
    $region39: #{tpu_custom_call.1} parent=1 // pred_check_branch
      %67 = sbr.rel (0) target = $region41
    $region40: #{tpu_custom_call.1} parent=1 // pred_region
      %68 = dma.done [#allocation4], 512
    $region41: #{tpu_custom_call.1} parent=1 // pred_fallthru
      _
    // Predicated region
    $region42: #{tpu_custom_call.1} parent=1 // pred_check
      _
    $region43: #{tpu_custom_call.1} parent=1 // pred_check_branch
      %70 = sbr.rel (0) target = $region45
    $region44: #{tpu_custom_call.1} parent=1 // pred_region
      %71 = dma.done [#allocation6], 512
    $region45: #{tpu_custom_call.1} parent=1 // pred_fallthru
      _
    // Predicated region
    $region46: #{tpu_custom_call.1} parent=1 // pred_check
      _
    $region47: #{tpu_custom_call.1} parent=1 // pred_check_branch
      %73 = sbr.rel (0) target = $region49
    $region48: #{tpu_custom_call.1} parent=1 // pred_region
      %74 = dma.done [#allocation6], 2048
    $region49: #{tpu_custom_call.1} parent=1 // pred_fallthru
      _
    %v75 = vld [vmem:[%s0] sm:$0x1]
    %v76 = vld [vmem:[#allocation3] sm:$0xff]
    %v77 = vld [vmem:[#allocation3 + $0x8] sm:$0xff]
    %v78 = vld [vmem:[#allocation3 + $0x10] sm:$0xff]
    %v79 = vld [vmem:[#allocation3 + $0x18] sm:$0xff]
    %v80 = vld [vmem:[%s3] sm:$0x1]
    %vm81 = vcmask 261120
    %v83 = vsel %vm81, %v75, 0
    %85 = vmatprep.subr.mxu0 0.0
    %86 = vmatpush1.msra.mxu0 %v76
    %87 = vmatprep.subr.mxu0 0.0
    %88 = vmatpush1.msra.mxu0 %v77
    %89 = vmatprep.subr.mxu0 0.0
    %90 = vmatpush1.msra.mxu0 %v78
    %91 = vmatprep.subr.mxu0 0.0
    %92 = vmatpush1.msra.mxu0 %v79
    %93 = vmatprep.subr.mxu0 0.0
    %94 = vmatpush1.msra.mxu0 0.0
    %95 = vmatprep.subr.mxu0 0.0
    %96 = vmatpush1.msra.mxu0 0.0
    %97 = vmatprep.subr.mxu0 0.0
    %98 = vmatpush1.msra.mxu0 0.0
    %99 = vmatprep.subr.mxu0 0.0
    %100 = vmatpush1.msra.mxu0 0.0
    %101 = vmatprep.subr.mxu0 0.0
    %102 = vmatpush1.msra.mxu0 0.0
    %103 = vmatprep.subr.mxu0 0.0
    %104 = vmatpush1.msra.mxu0 0.0
    %105 = vmatprep.subr.mxu0 0.0
    %106 = vmatpush1.msra.mxu0 0.0
    %107 = vmatprep.subr.mxu0 0.0
    %108 = vmatpush1.msra.mxu0 0.0
    %109 = vmatprep.subr.mxu0 0.0
    %110 = vmatpush1.msra.mxu0 0.0
    %111 = vmatprep.subr.mxu0 0.0
    %112 = vmatpush1.msra.mxu0 0.0
    %113 = vmatprep.subr.mxu0 0.0
    %114 = vmatpush1.msra.mxu0 0.0
    %115 = vmatprep.subr.mxu0 0.0
    %116 = vmatpush1.msra.mxu0 0.0
    %117 = vmatprep.subr.mxu0 0.0
    %118 = vmatpush1.msra.mxu0 0.0
    %119 = vmatprep.subr.mxu0 0.0
    %120 = vmatpush1.msra.mxu0 0.0
    %121 = vmatprep.subr.mxu0 0.0
    %122 = vmatpush1.msra.mxu0 0.0
    %123 = vmatprep.subr.mxu0 0.0
    %124 = vmatpush1.msra.mxu0 0.0
    %125 = vmatprep.subr.mxu0 0.0
    %126 = vmatpush1.msra.mxu0 0.0
    %127 = vmatprep.subr.mxu0 0.0
    %128 = vmatpush1.msra.mxu0 0.0
    %129 = vmatprep.subr.mxu0 0.0
    %130 = vmatpush1.msra.mxu0 0.0
    %131 = vmatprep.subr.mxu0 0.0
    %132 = vmatpush1.msra.mxu0 0.0
    %133 = vmatprep.subr.mxu0 0.0
    %134 = vmatpush1.msra.mxu0 0.0
    %135 = vmatprep.subr.mxu0 0.0
    %136 = vmatpush1.msra.mxu0 0.0
    %137 = vmatprep.subr.mxu0 0.0
    %138 = vmatpush1.msra.mxu0 0.0
    %139 = vmatprep.subr.mxu0 0.0
    %140 = vmatpush1.msra.mxu0 0.0
    %141 = vmatprep.subr.mxu0 0.0
    %142 = vmatpush1.msra.mxu0 0.0
    %143 = vmatprep.subr.mxu0 0.0
    %144 = vmatpush1.msra.mxu0 0.0
    %145 = vmatprep.subr.mxu0 0.0
    %146 = vmatpush1.msra.mxu0 0.0
    %147 = vmatprep.subr.mxu0 0.0
    %148 = vmatpush1.msra.mxu0 0.0
    %149 = vmatprep.mubr.f32.mxu0 0.0
    %150 = vmatmul.mubr.f32.gmra.mrb[0].mxu0 %v83
    %v151 = vpop.f32.mrb[0].mxu0
    %v152 = vadd.f32 %v80, %v151
    %v153 = vpop.f32.mrb[0].mxu0
    %154 = vdwg.mxu0
    %v155 = vld [vmem:[#allocation5] sm:$0xff]
    %v156 = vld [vmem:[#allocation5 + $0x8] sm:$0xff]
    %v157 = vld [vmem:[#allocation5 + $0x10] sm:$0xff]
    %v158 = vld [vmem:[#allocation5 + $0x18] sm:$0xff]
    %v160 = vsel %vm81, 0.0, 0
    %162 = vmatprep.subr.mxu0 0.0
    %163 = vmatpush1.msra.mxu0 %v155
    %164 = vmatprep.subr.mxu0 0.0
    %165 = vmatpush1.msra.mxu0 %v156
    %166 = vmatprep.subr.mxu0 0.0
    %167 = vmatpush1.msra.mxu0 %v157
    %168 = vmatprep.subr.mxu0 0.0
    %169 = vmatpush1.msra.mxu0 %v158
    %170 = vmatprep.subr.mxu0 0.0
    %171 = vmatpush1.msra.mxu0 0.0
    %172 = vmatprep.subr.mxu0 0.0
    %173 = vmatpush1.msra.mxu0 0.0
    %174 = vmatprep.subr.mxu0 0.0
    %175 = vmatpush1.msra.mxu0 0.0
    %176 = vmatprep.subr.mxu0 0.0
    %177 = vmatpush1.msra.mxu0 0.0
    %178 = vmatprep.subr.mxu0 0.0
    %179 = vmatpush1.msra.mxu0 0.0
    %180 = vmatprep.subr.mxu0 0.0
    %181 = vmatpush1.msra.mxu0 0.0
    %182 = vmatprep.subr.mxu0 0.0
    %183 = vmatpush1.msra.mxu0 0.0
    %184 = vmatprep.subr.mxu0 0.0
    %185 = vmatpush1.msra.mxu0 0.0
    %186 = vmatprep.subr.mxu0 0.0
    %187 = vmatpush1.msra.mxu0 0.0
    %188 = vmatprep.subr.mxu0 0.0
    %189 = vmatpush1.msra.mxu0 0.0
    %190 = vmatprep.subr.mxu0 0.0
    %191 = vmatpush1.msra.mxu0 0.0
    %192 = vmatprep.subr.mxu0 0.0
    %193 = vmatpush1.msra.mxu0 0.0
    %194 = vmatprep.subr.mxu0 0.0
    %195 = vmatpush1.msra.mxu0 0.0
    %196 = vmatprep.subr.mxu0 0.0
    %197 = vmatpush1.msra.mxu0 0.0
    %198 = vmatprep.subr.mxu0 0.0
    %199 = vmatpush1.msra.mxu0 0.0
    %200 = vmatprep.subr.mxu0 0.0
    %201 = vmatpush1.msra.mxu0 0.0
    %202 = vmatprep.subr.mxu0 0.0
    %203 = vmatpush1.msra.mxu0 0.0
    %204 = vmatprep.subr.mxu0 0.0
    %205 = vmatpush1.msra.mxu0 0.0
    %206 = vmatprep.subr.mxu0 0.0
    %207 = vmatpush1.msra.mxu0 0.0
    %208 = vmatprep.subr.mxu0 0.0
    %209 = vmatpush1.msra.mxu0 0.0
    %210 = vmatprep.subr.mxu0 0.0
    %211 = vmatpush1.msra.mxu0 0.0
    %212 = vmatprep.subr.mxu0 0.0
    %213 = vmatpush1.msra.mxu0 0.0
    %214 = vmatprep.subr.mxu0 0.0
    %215 = vmatpush1.msra.mxu0 0.0
    %216 = vmatprep.subr.mxu0 0.0
    %217 = vmatpush1.msra.mxu0 0.0
    %218 = vmatprep.subr.mxu0 0.0
    %219 = vmatpush1.msra.mxu0 0.0
    %220 = vmatprep.subr.mxu0 0.0
    %221 = vmatpush1.msra.mxu0 0.0
    %222 = vmatprep.subr.mxu0 0.0
    %223 = vmatpush1.msra.mxu0 0.0
    %224 = vmatprep.subr.mxu0 0.0
    %225 = vmatpush1.msra.mxu0 0.0
    %226 = vmatprep.mubr.f32.mxu0 0.0
    %227 = vmatmul.mubr.f32.gmra.mrb[0].mxu0 %v160
    %v228 = vpop.f32.mrb[0].mxu0
    %v229 = vadd.f32 0.0, %v228
    %v230 = vpop.f32.mrb[0].mxu0
    %231 = vdwg.mxu0
    %v232 = vadd.f32 %v152, %v229
    %v233 = vxor.u32 %v232, 2147483648
    %v234 = vmul.f32 %v233, 1.442695
    %v235 = vpow.pop %v234
    %v236 = vadd.f32 %v235, 1.0
    %v237 = vrcp.pop %v236
    %v238 = vmul.f32 1.0, %v237
    %v239 = vtanh.pop %v232
    %v240 = vmul.f32 %v238, 0.0
    %242 = vrot.lane.b32.xlu0 %v239, 64
    %v243 = vpop.permute.xlu0 %242
    %v245 = vmul.f32 %v238, %v243
    %247 = vrot.lane.b32.xlu0 %v245, 32
    %v248 = vpop.permute.xlu0 %247
    %v250 = vadd.f32 %v240, %v248
    %v251 = vtanh.pop %v250
    %253 = vrot.lane.b32.xlu0 %v251, 64
    %v254 = vpop.permute.xlu0 %253
    %v256 = vmul.f32 %v238, %v254
    %258 = vrot.lane.b32.xlu0 %v256, 32
    %v259 = vpop.permute.xlu0 %258
    %v260 = vsel %vm81, %v259, 0
    %262 = vmatprep.subr.mxu0 0.0
    %263 = vmatpush1.msra.mxu0 %v155
    %264 = vmatprep.subr.mxu0 0.0
    %265 = vmatpush1.msra.mxu0 %v156
    %266 = vmatprep.subr.mxu0 0.0
    %267 = vmatpush1.msra.mxu0 %v157
    %268 = vmatprep.subr.mxu0 0.0
    %269 = vmatpush1.msra.mxu0 %v158
    %270 = vmatprep.subr.mxu0 0.0
    %271 = vmatpush1.msra.mxu0 0.0
    %272 = vmatprep.subr.mxu0 0.0
    %273 = vmatpush1.msra.mxu0 0.0
    %274 = vmatprep.subr.mxu0 0.0
    %275 = vmatpush1.msra.mxu0 0.0
    %276 = vmatprep.subr.mxu0 0.0
    %277 = vmatpush1.msra.mxu0 0.0
    %278 = vmatprep.subr.mxu0 0.0
    %279 = vmatpush1.msra.mxu0 0.0
    %280 = vmatprep.subr.mxu0 0.0
    %281 = vmatpush1.msra.mxu0 0.0
    %282 = vmatprep.subr.mxu0 0.0
    %283 = vmatpush1.msra.mxu0 0.0
    %284 = vmatprep.subr.mxu0 0.0
    %285 = vmatpush1.msra.mxu0 0.0
    %286 = vmatprep.subr.mxu0 0.0
    %287 = vmatpush1.msra.mxu0 0.0
    %288 = vmatprep.subr.mxu0 0.0
    %289 = vmatpush1.msra.mxu0 0.0
    %290 = vmatprep.subr.mxu0 0.0
    %291 = vmatpush1.msra.mxu0 0.0
    %292 = vmatprep.subr.mxu0 0.0
    %293 = vmatpush1.msra.mxu0 0.0
    %294 = vmatprep.subr.mxu0 0.0
    %295 = vmatpush1.msra.mxu0 0.0
    %296 = vmatprep.subr.mxu0 0.0
    %297 = vmatpush1.msra.mxu0 0.0
    %298 = vmatprep.subr.mxu0 0.0
    %299 = vmatpush1.msra.mxu0 0.0
    %300 = vmatprep.subr.mxu0 0.0
    %301 = vmatpush1.msra.mxu0 0.0
    %302 = vmatprep.subr.mxu0 0.0
    %303 = vmatpush1.msra.mxu0 0.0
    %304 = vmatprep.subr.mxu0 0.0
    %305 = vmatpush1.msra.mxu0 0.0
    %306 = vmatprep.subr.mxu0 0.0
    %307 = vmatpush1.msra.mxu0 0.0
    %308 = vmatprep.subr.mxu0 0.0
    %309 = vmatpush1.msra.mxu0 0.0
    %310 = vmatprep.subr.mxu0 0.0
    %311 = vmatpush1.msra.mxu0 0.0
    %312 = vmatprep.subr.mxu0 0.0
    %313 = vmatpush1.msra.mxu0 0.0
    %314 = vmatprep.subr.mxu0 0.0
    %315 = vmatpush1.msra.mxu0 0.0
    %316 = vmatprep.subr.mxu0 0.0
    %317 = vmatpush1.msra.mxu0 0.0
    %318 = vmatprep.subr.mxu0 0.0
    %319 = vmatpush1.msra.mxu0 0.0
    %320 = vmatprep.subr.mxu0 0.0
    %321 = vmatpush1.msra.mxu0 0.0
    %322 = vmatprep.subr.mxu0 0.0
    %323 = vmatpush1.msra.mxu0 0.0
    %324 = vmatprep.subr.mxu0 0.0
    %325 = vmatpush1.msra.mxu0 0.0
    %326 = vmatprep.mubr.f32.mxu0 0.0
    %327 = vmatmul.mubr.f32.gmra.mrb[0].mxu0 %v260
    %v328 = vpop.f32.mrb[0].mxu0
    %v329 = vadd.f32 0.0, %v328
    %v330 = vpop.f32.mrb[0].mxu0
    %331 = vdwg.mxu0
    %v332 = vadd.f32 %v152, %v329
    %v333 = vxor.u32 %v332, 2147483648
    %v334 = vmul.f32 %v333, 1.442695
    %v335 = vpow.pop %v334
    %v336 = vadd.f32 %v335, 1.0
    %v337 = vrcp.pop %v336
    %v338 = vmul.f32 1.0, %v337
    %v339 = vtanh.pop %v332
    %v340 = vmul.f32 %v338, %v250
    %342 = vrot.lane.b32.xlu0 %v339, 64
    %v343 = vpop.permute.xlu0 %342
    %v345 = vmul.f32 %v338, %v343
    %347 = vrot.lane.b32.xlu0 %v345, 32
    %v348 = vpop.permute.xlu0 %347
    %v350 = vadd.f32 %v340, %v348
    %v351 = vtanh.pop %v350
    %353 = vrot.lane.b32.xlu0 %v351, 64
    %v354 = vpop.permute.xlu0 %353
    %v356 = vmul.f32 %v338, %v354
    %358 = vrot.lane.b32.xlu0 %v356, 32
    %v359 = vpop.permute.xlu0 %358
    %v360 = vsel %vm81, %v359, 0
    %362 = vmatprep.subr.mxu0 0.0
    %363 = vmatpush1.msra.mxu0 %v155
    %364 = vmatprep.subr.mxu0 0.0
    %365 = vmatpush1.msra.mxu0 %v156
    %366 = vmatprep.subr.mxu0 0.0
    %367 = vmatpush1.msra.mxu0 %v157
    %368 = vmatprep.subr.mxu0 0.0
    %369 = vmatpush1.msra.mxu0 %v158
    %370 = vmatprep.subr.mxu0 0.0
    %371 = vmatpush1.msra.mxu0 0.0
    %372 = vmatprep.subr.mxu0 0.0
    %373 = vmatpush1.msra.mxu0 0.0
    %374 = vmatprep.subr.mxu0 0.0
    %375 = vmatpush1.msra.mxu0 0.0
    %376 = vmatprep.subr.mxu0 0.0
    %377 = vmatpush1.msra.mxu0 0.0
    %378 = vmatprep.subr.mxu0 0.0
    %379 = vmatpush1.msra.mxu0 0.0
    %380 = vmatprep.subr.mxu0 0.0
    %381 = vmatpush1.msra.mxu0 0.0
    %382 = vmatprep.subr.mxu0 0.0
    %383 = vmatpush1.msra.mxu0 0.0
    %384 = vmatprep.subr.mxu0 0.0
    %385 = vmatpush1.msra.mxu0 0.0
    %386 = vmatprep.subr.mxu0 0.0
    %387 = vmatpush1.msra.mxu0 0.0
    %388 = vmatprep.subr.mxu0 0.0
    %389 = vmatpush1.msra.mxu0 0.0
    %390 = vmatprep.subr.mxu0 0.0
    %391 = vmatpush1.msra.mxu0 0.0
    %392 = vmatprep.subr.mxu0 0.0
    %393 = vmatpush1.msra.mxu0 0.0
    %394 = vmatprep.subr.mxu0 0.0
    %395 = vmatpush1.msra.mxu0 0.0
    %396 = vmatprep.subr.mxu0 0.0
    %397 = vmatpush1.msra.mxu0 0.0
    %398 = vmatprep.subr.mxu0 0.0
    %399 = vmatpush1.msra.mxu0 0.0
    %400 = vmatprep.subr.mxu0 0.0
    %401 = vmatpush1.msra.mxu0 0.0
    %402 = vmatprep.subr.mxu0 0.0
    %403 = vmatpush1.msra.mxu0 0.0
    %404 = vmatprep.subr.mxu0 0.0
    %405 = vmatpush1.msra.mxu0 0.0
    %406 = vmatprep.subr.mxu0 0.0
    %407 = vmatpush1.msra.mxu0 0.0
    %408 = vmatprep.subr.mxu0 0.0
    %409 = vmatpush1.msra.mxu0 0.0
    %410 = vmatprep.subr.mxu0 0.0
    %411 = vmatpush1.msra.mxu0 0.0
    %412 = vmatprep.subr.mxu0 0.0
    %413 = vmatpush1.msra.mxu0 0.0
    %414 = vmatprep.subr.mxu0 0.0
    %415 = vmatpush1.msra.mxu0 0.0
    %416 = vmatprep.subr.mxu0 0.0
    %417 = vmatpush1.msra.mxu0 0.0
    %418 = vmatprep.subr.mxu0 0.0
    %419 = vmatpush1.msra.mxu0 0.0
    %420 = vmatprep.subr.mxu0 0.0
    %421 = vmatpush1.msra.mxu0 0.0
    %422 = vmatprep.subr.mxu0 0.0
    %423 = vmatpush1.msra.mxu0 0.0
    %424 = vmatprep.subr.mxu0 0.0
    %425 = vmatpush1.msra.mxu0 0.0
    %426 = vmatprep.mubr.f32.mxu0 0.0
    %427 = vmatmul.mubr.f32.gmra.mrb[0].mxu0 %v360
    %v428 = vpop.f32.mrb[0].mxu0
    %v429 = vadd.f32 0.0, %v428
    %v430 = vpop.f32.mrb[0].mxu0
    %431 = vdwg.mxu0
    %v432 = vadd.f32 %v152, %v429
    %v433 = vxor.u32 %v432, 2147483648
    %v434 = vmul.f32 %v433, 1.442695
    %v435 = vpow.pop %v434
    %v436 = vadd.f32 %v435, 1.0
    %v437 = vrcp.pop %v436
    %v438 = vmul.f32 1.0, %v437
    %v439 = vtanh.pop %v432
    %v440 = vmul.f32 %v438, %v350
    %442 = vrot.lane.b32.xlu0 %v439, 64
    %v443 = vpop.permute.xlu0 %442
    %v445 = vmul.f32 %v438, %v443
    %447 = vrot.lane.b32.xlu0 %v445, 32
    %v448 = vpop.permute.xlu0 %447
    %v450 = vadd.f32 %v440, %v448
    %v451 = vtanh.pop %v450
    %453 = vrot.lane.b32.xlu0 %v451, 64
    %v454 = vpop.permute.xlu0 %453
    %v456 = vmul.f32 %v438, %v454
    %458 = vrot.lane.b32.xlu0 %v456, 32
    %v459 = vpop.permute.xlu0 %458
    %v460 = vsel %vm81, %v459, 0
    %462 = vmatprep.subr.mxu0 0.0
    %463 = vmatpush1.msra.mxu0 %v155
    %464 = vmatprep.subr.mxu0 0.0
    %465 = vmatpush1.msra.mxu0 %v156
    %466 = vmatprep.subr.mxu0 0.0
    %467 = vmatpush1.msra.mxu0 %v157
    %468 = vmatprep.subr.mxu0 0.0
    %469 = vmatpush1.msra.mxu0 %v158
    %470 = vmatprep.subr.mxu0 0.0
    %471 = vmatpush1.msra.mxu0 0.0
    %472 = vmatprep.subr.mxu0 0.0
    %473 = vmatpush1.msra.mxu0 0.0
    %474 = vmatprep.subr.mxu0 0.0
    %475 = vmatpush1.msra.mxu0 0.0
    %476 = vmatprep.subr.mxu0 0.0
    %477 = vmatpush1.msra.mxu0 0.0
    %478 = vmatprep.subr.mxu0 0.0
    %479 = vmatpush1.msra.mxu0 0.0
    %480 = vmatprep.subr.mxu0 0.0
    %481 = vmatpush1.msra.mxu0 0.0
    %482 = vmatprep.subr.mxu0 0.0
    %483 = vmatpush1.msra.mxu0 0.0
    %484 = vmatprep.subr.mxu0 0.0
    %485 = vmatpush1.msra.mxu0 0.0
    %486 = vmatprep.subr.mxu0 0.0
    %487 = vmatpush1.msra.mxu0 0.0
    %488 = vmatprep.subr.mxu0 0.0
    %489 = vmatpush1.msra.mxu0 0.0
    %490 = vmatprep.subr.mxu0 0.0
    %491 = vmatpush1.msra.mxu0 0.0
    %492 = vmatprep.subr.mxu0 0.0
    %493 = vmatpush1.msra.mxu0 0.0
    %494 = vmatprep.subr.mxu0 0.0
    %495 = vmatpush1.msra.mxu0 0.0
    %496 = vmatprep.subr.mxu0 0.0
    %497 = vmatpush1.msra.mxu0 0.0
    %498 = vmatprep.subr.mxu0 0.0
    %499 = vmatpush1.msra.mxu0 0.0
    %500 = vmatprep.subr.mxu0 0.0
    %501 = vmatpush1.msra.mxu0 0.0
    %502 = vmatprep.subr.mxu0 0.0
    %503 = vmatpush1.msra.mxu0 0.0
    %504 = vmatprep.subr.mxu0 0.0
    %505 = vmatpush1.msra.mxu0 0.0
    %506 = vmatprep.subr.mxu0 0.0
    %507 = vmatpush1.msra.mxu0 0.0
    %508 = vmatprep.subr.mxu0 0.0
    %509 = vmatpush1.msra.mxu0 0.0
    %510 = vmatprep.subr.mxu0 0.0
    %511 = vmatpush1.msra.mxu0 0.0
    %512 = vmatprep.subr.mxu0 0.0
    %513 = vmatpush1.msra.mxu0 0.0
    %514 = vmatprep.subr.mxu0 0.0
    %515 = vmatpush1.msra.mxu0 0.0
    %516 = vmatprep.subr.mxu0 0.0
    %517 = vmatpush1.msra.mxu0 0.0
    %518 = vmatprep.subr.mxu0 0.0
    %519 = vmatpush1.msra.mxu0 0.0
    %520 = vmatprep.subr.mxu0 0.0
    %521 = vmatpush1.msra.mxu0 0.0
    %522 = vmatprep.subr.mxu0 0.0
    %523 = vmatpush1.msra.mxu0 0.0
    %524 = vmatprep.subr.mxu0 0.0
    %525 = vmatpush1.msra.mxu0 0.0
    %526 = vmatprep.mubr.f32.mxu0 0.0
    %527 = vmatmul.mubr.f32.gmra.mrb[0].mxu0 %v460
    %v528 = vpop.f32.mrb[0].mxu0
    %v529 = vadd.f32 0.0, %v528
    %v530 = vpop.f32.mrb[0].mxu0
    %531 = vdwg.mxu0
    %v532 = vadd.f32 %v152, %v529
    %v533 = vxor.u32 %v532, 2147483648
    %v534 = vmul.f32 %v533, 1.442695
    %v535 = vpow.pop %v534
    %v536 = vadd.f32 %v535, 1.0
    %v537 = vrcp.pop %v536
    %v538 = vmul.f32 1.0, %v537
    %v539 = vtanh.pop %v532
    %v540 = vmul.f32 %v538, %v450
    %542 = vrot.lane.b32.xlu0 %v539, 64
    %v543 = vpop.permute.xlu0 %542
    %v545 = vmul.f32 %v538, %v543
    %547 = vrot.lane.b32.xlu0 %v545, 32
    %v548 = vpop.permute.xlu0 %547
    %v550 = vadd.f32 %v540, %v548
    %v551 = vtanh.pop %v550
    %553 = vrot.lane.b32.xlu0 %v551, 64
    %v554 = vpop.permute.xlu0 %553
    %v556 = vmul.f32 %v538, %v554
    %558 = vrot.lane.b32.xlu0 %v556, 32
    %v559 = vpop.permute.xlu0 %558
    %v560 = vsel %vm81, %v559, 0
    %562 = vmatprep.subr.mxu0 0.0
    %563 = vmatpush1.msra.mxu0 %v155
    %564 = vmatprep.subr.mxu0 0.0
    %565 = vmatpush1.msra.mxu0 %v156
    %566 = vmatprep.subr.mxu0 0.0
    %567 = vmatpush1.msra.mxu0 %v157
    %568 = vmatprep.subr.mxu0 0.0
    %569 = vmatpush1.msra.mxu0 %v158
    %570 = vmatprep.subr.mxu0 0.0
    %571 = vmatpush1.msra.mxu0 0.0
    %572 = vmatprep.subr.mxu0 0.0
    %573 = vmatpush1.msra.mxu0 0.0
    %574 = vmatprep.subr.mxu0 0.0
    %575 = vmatpush1.msra.mxu0 0.0
    %576 = vmatprep.subr.mxu0 0.0
    %577 = vmatpush1.msra.mxu0 0.0
    %578 = vmatprep.subr.mxu0 0.0
    %579 = vmatpush1.msra.mxu0 0.0
    %580 = vmatprep.subr.mxu0 0.0
    %581 = vmatpush1.msra.mxu0 0.0
    %582 = vmatprep.subr.mxu0 0.0
    %583 = vmatpush1.msra.mxu0 0.0
    %584 = vmatprep.subr.mxu0 0.0
    %585 = vmatpush1.msra.mxu0 0.0
    %586 = vmatprep.subr.mxu0 0.0
    %587 = vmatpush1.msra.mxu0 0.0
    %588 = vmatprep.subr.mxu0 0.0
    %589 = vmatpush1.msra.mxu0 0.0
    %590 = vmatprep.subr.mxu0 0.0
    %591 = vmatpush1.msra.mxu0 0.0
    %592 = vmatprep.subr.mxu0 0.0
    %593 = vmatpush1.msra.mxu0 0.0
    %594 = vmatprep.subr.mxu0 0.0
    %595 = vmatpush1.msra.mxu0 0.0
    %596 = vmatprep.subr.mxu0 0.0
    %597 = vmatpush1.msra.mxu0 0.0
    %598 = vmatprep.subr.mxu0 0.0
    %599 = vmatpush1.msra.mxu0 0.0
    %600 = vmatprep.subr.mxu0 0.0
    %601 = vmatpush1.msra.mxu0 0.0
    %602 = vmatprep.subr.mxu0 0.0
    %603 = vmatpush1.msra.mxu0 0.0
    %604 = vmatprep.subr.mxu0 0.0
    %605 = vmatpush1.msra.mxu0 0.0
    %606 = vmatprep.subr.mxu0 0.0
    %607 = vmatpush1.msra.mxu0 0.0
    %608 = vmatprep.subr.mxu0 0.0
    %609 = vmatpush1.msra.mxu0 0.0
    %610 = vmatprep.subr.mxu0 0.0
    %611 = vmatpush1.msra.mxu0 0.0
    %612 = vmatprep.subr.mxu0 0.0
    %613 = vmatpush1.msra.mxu0 0.0
    %614 = vmatprep.subr.mxu0 0.0
    %615 = vmatpush1.msra.mxu0 0.0
    %616 = vmatprep.subr.mxu0 0.0
    %617 = vmatpush1.msra.mxu0 0.0
    %618 = vmatprep.subr.mxu0 0.0
    %619 = vmatpush1.msra.mxu0 0.0
    %620 = vmatprep.subr.mxu0 0.0
    %621 = vmatpush1.msra.mxu0 0.0
    %622 = vmatprep.subr.mxu0 0.0
    %623 = vmatpush1.msra.mxu0 0.0
    %624 = vmatprep.subr.mxu0 0.0
    %625 = vmatpush1.msra.mxu0 0.0
    %626 = vmatprep.mubr.f32.mxu0 0.0
    %627 = vmatmul.mubr.f32.gmra.mrb[0].mxu0 %v560
    %v628 = vpop.f32.mrb[0].mxu0
    %v629 = vadd.f32 0.0, %v628
    %v630 = vpop.f32.mrb[0].mxu0
    %631 = vdwg.mxu0
    %v632 = vadd.f32 %v152, %v629
    %v633 = vxor.u32 %v632, 2147483648
    %v634 = vmul.f32 %v633, 1.442695
    %v635 = vpow.pop %v634
    %v636 = vadd.f32 %v635, 1.0
    %v637 = vrcp.pop %v636
    %v638 = vmul.f32 1.0, %v637
    %v639 = vtanh.pop %v632
    %v640 = vmul.f32 %v638, %v550
    %642 = vrot.lane.b32.xlu0 %v639, 64
    %v643 = vpop.permute.xlu0 %642
    %v645 = vmul.f32 %v638, %v643
    %647 = vrot.lane.b32.xlu0 %v645, 32
    %v648 = vpop.permute.xlu0 %647
    %v650 = vadd.f32 %v640, %v648
    %v651 = vtanh.pop %v650
    %653 = vrot.lane.b32.xlu0 %v651, 64
    %v654 = vpop.permute.xlu0 %653
    %v656 = vmul.f32 %v638, %v654
    %658 = vrot.lane.b32.xlu0 %v656, 32
    %v659 = vpop.permute.xlu0 %658
    %v660 = vsel %vm81, %v659, 0
    %662 = vmatprep.subr.mxu0 0.0
    %663 = vmatpush1.msra.mxu0 %v155
    %664 = vmatprep.subr.mxu0 0.0
    %665 = vmatpush1.msra.mxu0 %v156
    %666 = vmatprep.subr.mxu0 0.0
    %667 = vmatpush1.msra.mxu0 %v157
    %668 = vmatprep.subr.mxu0 0.0
    %669 = vmatpush1.msra.mxu0 %v158
    %670 = vmatprep.subr.mxu0 0.0
    %671 = vmatpush1.msra.mxu0 0.0
    %672 = vmatprep.subr.mxu0 0.0
    %673 = vmatpush1.msra.mxu0 0.0
    %674 = vmatprep.subr.mxu0 0.0
    %675 = vmatpush1.msra.mxu0 0.0
    %676 = vmatprep.subr.mxu0 0.0
    %677 = vmatpush1.msra.mxu0 0.0
    %678 = vmatprep.subr.mxu0 0.0
    %679 = vmatpush1.msra.mxu0 0.0
    %680 = vmatprep.subr.mxu0 0.0
    %681 = vmatpush1.msra.mxu0 0.0
    %682 = vmatprep.subr.mxu0 0.0
    %683 = vmatpush1.msra.mxu0 0.0
    %684 = vmatprep.subr.mxu0 0.0
    %685 = vmatpush1.msra.mxu0 0.0
    %686 = vmatprep.subr.mxu0 0.0
    %687 = vmatpush1.msra.mxu0 0.0
    %688 = vmatprep.subr.mxu0 0.0
    %689 = vmatpush1.msra.mxu0 0.0
    %690 = vmatprep.subr.mxu0 0.0
    %691 = vmatpush1.msra.mxu0 0.0
    %692 = vmatprep.subr.mxu0 0.0
    %693 = vmatpush1.msra.mxu0 0.0
    %694 = vmatprep.subr.mxu0 0.0
    %695 = vmatpush1.msra.mxu0 0.0
    %696 = vmatprep.subr.mxu0 0.0
    %697 = vmatpush1.msra.mxu0 0.0
    %698 = vmatprep.subr.mxu0 0.0
    %699 = vmatpush1.msra.mxu0 0.0
    %700 = vmatprep.subr.mxu0 0.0
    %701 = vmatpush1.msra.mxu0 0.0
    %702 = vmatprep.subr.mxu0 0.0
    %703 = vmatpush1.msra.mxu0 0.0
    %704 = vmatprep.subr.mxu0 0.0
    %705 = vmatpush1.msra.mxu0 0.0
    %706 = vmatprep.subr.mxu0 0.0
    %707 = vmatpush1.msra.mxu0 0.0
    %708 = vmatprep.subr.mxu0 0.0
    %709 = vmatpush1.msra.mxu0 0.0
    %710 = vmatprep.subr.mxu0 0.0
    %711 = vmatpush1.msra.mxu0 0.0
    %712 = vmatprep.subr.mxu0 0.0
    %713 = vmatpush1.msra.mxu0 0.0
    %714 = vmatprep.subr.mxu0 0.0
    %715 = vmatpush1.msra.mxu0 0.0
    %716 = vmatprep.subr.mxu0 0.0
    %717 = vmatpush1.msra.mxu0 0.0
    %718 = vmatprep.subr.mxu0 0.0
    %719 = vmatpush1.msra.mxu0 0.0
    %720 = vmatprep.subr.mxu0 0.0
    %721 = vmatpush1.msra.mxu0 0.0
    %722 = vmatprep.subr.mxu0 0.0
    %723 = vmatpush1.msra.mxu0 0.0
    %724 = vmatprep.subr.mxu0 0.0
    %725 = vmatpush1.msra.mxu0 0.0
    %726 = vmatprep.mubr.f32.mxu0 0.0
    %727 = vmatmul.mubr.f32.gmra.mrb[0].mxu0 %v660
    %v728 = vpop.f32.mrb[0].mxu0
    %v729 = vadd.f32 0.0, %v728
    %v730 = vpop.f32.mrb[0].mxu0
    %731 = vdwg.mxu0
    %v732 = vadd.f32 %v152, %v729
    %v733 = vxor.u32 %v732, 2147483648
    %v734 = vmul.f32 %v733, 1.442695
    %v735 = vpow.pop %v734
    %v736 = vadd.f32 %v735, 1.0
    %v737 = vrcp.pop %v736
    %v738 = vmul.f32 1.0, %v737
    %v739 = vtanh.pop %v732
    %v740 = vmul.f32 %v738, %v650
    %742 = vrot.lane.b32.xlu0 %v739, 64
    %v743 = vpop.permute.xlu0 %742
    %v745 = vmul.f32 %v738, %v743
    %747 = vrot.lane.b32.xlu0 %v745, 32
    %v748 = vpop.permute.xlu0 %747
    %v750 = vadd.f32 %v740, %v748
    %v751 = vtanh.pop %v750
    %753 = vrot.lane.b32.xlu0 %v751, 64
    %v754 = vpop.permute.xlu0 %753
    %v756 = vmul.f32 %v738, %v754
    %758 = vrot.lane.b32.xlu0 %v756, 32
    %v759 = vpop.permute.xlu0 %758
    %v760 = vsel %vm81, %v759, 0
    %762 = vmatprep.subr.mxu0 0.0
    %763 = vmatpush1.msra.mxu0 %v155
    %764 = vmatprep.subr.mxu0 0.0
    %765 = vmatpush1.msra.mxu0 %v156
    %766 = vmatprep.subr.mxu0 0.0
    %767 = vmatpush1.msra.mxu0 %v157
    %768 = vmatprep.subr.mxu0 0.0
    %769 = vmatpush1.msra.mxu0 %v158
    %770 = vmatprep.subr.mxu0 0.0
    %771 = vmatpush1.msra.mxu0 0.0
    %772 = vmatprep.subr.mxu0 0.0
    %773 = vmatpush1.msra.mxu0 0.0
    %774 = vmatprep.subr.mxu0 0.0
    %775 = vmatpush1.msra.mxu0 0.0
    %776 = vmatprep.subr.mxu0 0.0
    %777 = vmatpush1.msra.mxu0 0.0
    %778 = vmatprep.subr.mxu0 0.0
    %779 = vmatpush1.msra.mxu0 0.0
    %780 = vmatprep.subr.mxu0 0.0
    %781 = vmatpush1.msra.mxu0 0.0
    %782 = vmatprep.subr.mxu0 0.0
    %783 = vmatpush1.msra.mxu0 0.0
    %784 = vmatprep.subr.mxu0 0.0
    %785 = vmatpush1.msra.mxu0 0.0
    %786 = vmatprep.subr.mxu0 0.0
    %787 = vmatpush1.msra.mxu0 0.0
    %788 = vmatprep.subr.mxu0 0.0
    %789 = vmatpush1.msra.mxu0 0.0
    %790 = vmatprep.subr.mxu0 0.0
    %791 = vmatpush1.msra.mxu0 0.0
    %792 = vmatprep.subr.mxu0 0.0
    %793 = vmatpush1.msra.mxu0 0.0
    %794 = vmatprep.subr.mxu0 0.0
    %795 = vmatpush1.msra.mxu0 0.0
    %796 = vmatprep.subr.mxu0 0.0
    %797 = vmatpush1.msra.mxu0 0.0
    %798 = vmatprep.subr.mxu0 0.0
    %799 = vmatpush1.msra.mxu0 0.0
    %800 = vmatprep.subr.mxu0 0.0
    %801 = vmatpush1.msra.mxu0 0.0
    %802 = vmatprep.subr.mxu0 0.0
    %803 = vmatpush1.msra.mxu0 0.0
    %804 = vmatprep.subr.mxu0 0.0
    %805 = vmatpush1.msra.mxu0 0.0
    %806 = vmatprep.subr.mxu0 0.0
    %807 = vmatpush1.msra.mxu0 0.0
    %808 = vmatprep.subr.mxu0 0.0
    %809 = vmatpush1.msra.mxu0 0.0
    %810 = vmatprep.subr.mxu0 0.0
    %811 = vmatpush1.msra.mxu0 0.0
    %812 = vmatprep.subr.mxu0 0.0
    %813 = vmatpush1.msra.mxu0 0.0
    %814 = vmatprep.subr.mxu0 0.0
    %815 = vmatpush1.msra.mxu0 0.0
    %816 = vmatprep.subr.mxu0 0.0
    %817 = vmatpush1.msra.mxu0 0.0
    %818 = vmatprep.subr.mxu0 0.0
    %819 = vmatpush1.msra.mxu0 0.0
    %820 = vmatprep.subr.mxu0 0.0
    %821 = vmatpush1.msra.mxu0 0.0
    %822 = vmatprep.subr.mxu0 0.0
    %823 = vmatpush1.msra.mxu0 0.0
    %824 = vmatprep.subr.mxu0 0.0
    %825 = vmatpush1.msra.mxu0 0.0
    %826 = vmatprep.mubr.f32.mxu0 0.0
    %827 = vmatmul.mubr.f32.gmra.mrb[0].mxu0 %v760
    %v828 = vpop.f32.mrb[0].mxu0
    %v829 = vadd.f32 0.0, %v828
    %v830 = vpop.f32.mrb[0].mxu0
    %831 = vdwg.mxu0
    %v832 = vadd.f32 %v152, %v829
    %v833 = vxor.u32 %v832, 2147483648
    %v834 = vmul.f32 %v833, 1.442695
    %v835 = vpow.pop %v834
    %v836 = vadd.f32 %v835, 1.0
    %v837 = vrcp.pop %v836
    %v838 = vmul.f32 1.0, %v837
    %v839 = vtanh.pop %v832
    %v840 = vmul.f32 %v838, %v750
    %842 = vrot.lane.b32.xlu0 %v839, 64
    %v843 = vpop.permute.xlu0 %842
    %v845 = vmul.f32 %v838, %v843
    %847 = vrot.lane.b32.xlu0 %v845, 32
    %v848 = vpop.permute.xlu0 %847
    %v850 = vadd.f32 %v840, %v848
    %v851 = vtanh.pop %v850
    %853 = vrot.lane.b32.xlu0 %v851, 64
    %v854 = vpop.permute.xlu0 %853
    %v856 = vmul.f32 %v838, %v854
    %858 = vrot.lane.b32.xlu0 %v856, 32
    %v859 = vpop.permute.xlu0 %858
    %v860 = vsel %vm81, %v859, 0
    %862 = vmatprep.subr.mxu0 0.0
    %863 = vmatpush1.msra.mxu0 %v155
    %864 = vmatprep.subr.mxu0 0.0
    %865 = vmatpush1.msra.mxu0 %v156
    %866 = vmatprep.subr.mxu0 0.0
    %867 = vmatpush1.msra.mxu0 %v157
    %868 = vmatprep.subr.mxu0 0.0
    %869 = vmatpush1.msra.mxu0 %v158
    %870 = vmatprep.subr.mxu0 0.0
    %871 = vmatpush1.msra.mxu0 0.0
    %872 = vmatprep.subr.mxu0 0.0
    %873 = vmatpush1.msra.mxu0 0.0
    %874 = vmatprep.subr.mxu0 0.0
    %875 = vmatpush1.msra.mxu0 0.0
    %876 = vmatprep.subr.mxu0 0.0
    %877 = vmatpush1.msra.mxu0 0.0
    %878 = vmatprep.subr.mxu0 0.0
    %879 = vmatpush1.msra.mxu0 0.0
    %880 = vmatprep.subr.mxu0 0.0
    %881 = vmatpush1.msra.mxu0 0.0
    %882 = vmatprep.subr.mxu0 0.0
    %883 = vmatpush1.msra.mxu0 0.0
    %884 = vmatprep.subr.mxu0 0.0
    %885 = vmatpush1.msra.mxu0 0.0
    %886 = vmatprep.subr.mxu0 0.0
    %887 = vmatpush1.msra.mxu0 0.0
    %888 = vmatprep.subr.mxu0 0.0
    %889 = vmatpush1.msra.mxu0 0.0
    %890 = vmatprep.subr.mxu0 0.0
    %891 = vmatpush1.msra.mxu0 0.0
    %892 = vmatprep.subr.mxu0 0.0
    %893 = vmatpush1.msra.mxu0 0.0
    %894 = vmatprep.subr.mxu0 0.0
    %895 = vmatpush1.msra.mxu0 0.0
    %896 = vmatprep.subr.mxu0 0.0
    %897 = vmatpush1.msra.mxu0 0.0
    %898 = vmatprep.subr.mxu0 0.0
    %899 = vmatpush1.msra.mxu0 0.0
    %900 = vmatprep.subr.mxu0 0.0
    %901 = vmatpush1.msra.mxu0 0.0
    %902 = vmatprep.subr.mxu0 0.0
    %903 = vmatpush1.msra.mxu0 0.0
    %904 = vmatprep.subr.mxu0 0.0
    %905 = vmatpush1.msra.mxu0 0.0
    %906 = vmatprep.subr.mxu0 0.0
    %907 = vmatpush1.msra.mxu0 0.0
    %908 = vmatprep.subr.mxu0 0.0
    %909 = vmatpush1.msra.mxu0 0.0
    %910 = vmatprep.subr.mxu0 0.0
    %911 = vmatpush1.msra.mxu0 0.0
    %912 = vmatprep.subr.mxu0 0.0
    %913 = vmatpush1.msra.mxu0 0.0
    %914 = vmatprep.subr.mxu0 0.0
    %915 = vmatpush1.msra.mxu0 0.0
    %916 = vmatprep.subr.mxu0 0.0
    %917 = vmatpush1.msra.mxu0 0.0
    %918 = vmatprep.subr.mxu0 0.0
    %919 = vmatpush1.msra.mxu0 0.0
    %920 = vmatprep.subr.mxu0 0.0
    %921 = vmatpush1.msra.mxu0 0.0
    %922 = vmatprep.subr.mxu0 0.0
    %923 = vmatpush1.msra.mxu0 0.0
    %924 = vmatprep.subr.mxu0 0.0
    %925 = vmatpush1.msra.mxu0 0.0
    %926 = vmatprep.mubr.f32.mxu0 0.0
    %927 = vmatmul.mubr.f32.gmra.mrb[0].mxu0 %v860
    %v928 = vpop.f32.mrb[0].mxu0
    %v929 = vadd.f32 0.0, %v928
    %v930 = vpop.f32.mrb[0].mxu0
    %931 = vdwg.mxu0
    %v932 = vadd.f32 %v152, %v929
    %v933 = vxor.u32 %v932, 2147483648
    %v934 = vmul.f32 %v933, 1.442695
    %v935 = vpow.pop %v934
    %v936 = vadd.f32 %v935, 1.0
    %v937 = vrcp.pop %v936
    %v938 = vmul.f32 1.0, %v937
    %v939 = vtanh.pop %v932
    %v940 = vmul.f32 %v938, %v850
    %942 = vrot.lane.b32.xlu0 %v939, 64
    %v943 = vpop.permute.xlu0 %942
    %v945 = vmul.f32 %v938, %v943
    %947 = vrot.lane.b32.xlu0 %v945, 32
    %v948 = vpop.permute.xlu0 %947
    %v950 = vadd.f32 %v940, %v948
    %v951 = vtanh.pop %v950
    %953 = vrot.lane.b32.xlu0 %v951, 64
    %v954 = vpop.permute.xlu0 %953
    %v956 = vmul.f32 %v938, %v954
    %v957 = vrot.slane %v356, 7
    %v959 = vrot.slane %v456, 6
    %v961 = vrot.slane %v556, 5
    %v963 = vrot.slane %v656, 4
    %v965 = vrot.slane %v756, 3
    %v967 = vrot.slane %v856, 2
    %v970 = vrot.slane %v956, 1
    %vm972 = vcmask 1040384
    %v973 = vsel %vm972, %v256, %v957
    %vm974 = vcmask 1041408
    %v975 = vsel %vm974, %v973, %v959
    %vm976 = vcmask 1042432
    %v977 = vsel %vm976, %v975, %v961
    %vm978 = vcmask 1043456
    %v979 = vsel %vm978, %v977, %v963
    %vm980 = vcmask 1044480
    %v981 = vsel %vm980, %v979, %v965
    %vm982 = vcmask 1045504
    %v983 = vsel %vm982, %v981, %v967
    %vm984 = vcmask 1046528
    %v985 = vsel %vm984, %v983, %v970
    %v986 = vld [vmem:[%s4] sm:$0xff]
    %v987 = vld [vmem:[%s4 + $0x8] sm:$0xff]
    %v988 = vld [vmem:[%s4 + $0x10] sm:$0xff]
    %v989 = vld [vmem:[%s4 + $0x18] sm:$0xff]
    %v990 = vld [vmem:[%s4 + $0x20] sm:$0xff]
    %v991 = vld [vmem:[%s4 + $0x28] sm:$0xff]
    %v992 = vld [vmem:[%s4 + $0x30] sm:$0xff]
    %v993 = vld [vmem:[%s4 + $0x38] sm:$0xff]
    %v994 = vld [vmem:[%s6] sm:$0x3]
    %v996 = vlaneseq
    %v997 = vshrl.u32 %v996, 7
    %v998 = vsub.s32 0, %v997
    %v999 = vrot.slane %v994, %v998
    %v1000 = vlaneseq
    %v1001 = vshrl.u32 %v1000, 7
    %v1002 = vsub.s32 1, %v1001
    %v1003 = vrot.slane %v994, %v1002
    %1007 = vrot.lane.b32.xlu0 %v985, 32
    %v1008 = vpop.permute.xlu0 %1007
    %v1009 = vsel %vm81, %v1008, 0
    %1011 = vmatprep.subr.mxu0 %v987
    %1012 = vmatpush1.msra.mxu0 %v986
    %1013 = vmatprep.subr.mxu0 %v989
    %1014 = vmatpush1.msra.mxu0 %v988
    %1015 = vmatprep.subr.mxu0 %v991
    %1016 = vmatpush1.msra.mxu0 %v990
    %1017 = vmatprep.subr.mxu0 %v993
    %1018 = vmatpush1.msra.mxu0 %v992
    %1019 = vmatprep.subr.mxu0 0.0
    %1020 = vmatpush1.msra.mxu0 0.0
    %1021 = vmatprep.subr.mxu0 0.0
    %1022 = vmatpush1.msra.mxu0 0.0
    %1023 = vmatprep.subr.mxu0 0.0
    %1024 = vmatpush1.msra.mxu0 0.0
    %1025 = vmatprep.subr.mxu0 0.0
    %1026 = vmatpush1.msra.mxu0 0.0
    %1027 = vmatprep.subr.mxu0 0.0
    %1028 = vmatpush1.msra.mxu0 0.0
    %1029 = vmatprep.subr.mxu0 0.0
    %1030 = vmatpush1.msra.mxu0 0.0
    %1031 = vmatprep.subr.mxu0 0.0
    %1032 = vmatpush1.msra.mxu0 0.0
    %1033 = vmatprep.subr.mxu0 0.0
    %1034 = vmatpush1.msra.mxu0 0.0
    %1035 = vmatprep.subr.mxu0 0.0
    %1036 = vmatpush1.msra.mxu0 0.0
    %1037 = vmatprep.subr.mxu0 0.0
    %1038 = vmatpush1.msra.mxu0 0.0
    %1039 = vmatprep.subr.mxu0 0.0
    %1040 = vmatpush1.msra.mxu0 0.0
    %1041 = vmatprep.subr.mxu0 0.0
    %1042 = vmatpush1.msra.mxu0 0.0
    %1043 = vmatprep.subr.mxu0 0.0
    %1044 = vmatpush1.msra.mxu0 0.0
    %1045 = vmatprep.subr.mxu0 0.0
    %1046 = vmatpush1.msra.mxu0 0.0
    %1047 = vmatprep.subr.mxu0 0.0
    %1048 = vmatpush1.msra.mxu0 0.0
    %1049 = vmatprep.subr.mxu0 0.0
    %1050 = vmatpush1.msra.mxu0 0.0
    %1051 = vmatprep.subr.mxu0 0.0
    %1052 = vmatpush1.msra.mxu0 0.0
    %1053 = vmatprep.subr.mxu0 0.0
    %1054 = vmatpush1.msra.mxu0 0.0
    %1055 = vmatprep.subr.mxu0 0.0
    %1056 = vmatpush1.msra.mxu0 0.0
    %1057 = vmatprep.subr.mxu0 0.0
    %1058 = vmatpush1.msra.mxu0 0.0
    %1059 = vmatprep.subr.mxu0 0.0
    %1060 = vmatpush1.msra.mxu0 0.0
    %1061 = vmatprep.subr.mxu0 0.0
    %1062 = vmatpush1.msra.mxu0 0.0
    %1063 = vmatprep.subr.mxu0 0.0
    %1064 = vmatpush1.msra.mxu0 0.0
    %1065 = vmatprep.subr.mxu0 0.0
    %1066 = vmatpush1.msra.mxu0 0.0
    %1067 = vmatprep.subr.mxu0 0.0
    %1068 = vmatpush1.msra.mxu0 0.0
    %1069 = vmatprep.subr.mxu0 0.0
    %1070 = vmatpush1.msra.mxu0 0.0
    %1071 = vmatprep.subr.mxu0 0.0
    %1072 = vmatpush1.msra.mxu0 0.0
    %1073 = vmatprep.subr.mxu0 0.0
    %1074 = vmatpush1.msra.mxu0 0.0
    %1075 = vmatprep.mubr.f32.mxu0 0.0
    %1076 = vmatmul.mubr.f32.gmra.mrb[0].mxu0 %v1009
    %v1077 = vpop.f32.mrb[0].mxu0
    %v1078 = vadd.f32 %v999, %v1077
    %v1079 = vpop.f32.mrb[0].mxu0
    %v1080 = vadd.f32 %v1003, %v1079
    %1081 = vdwg.mxu0
    %v1082 = vld [vmem:[#allocation7] sm:$0xff]
    %v1083 = vld [vmem:[#allocation7 + $0x8] sm:$0xff]
    %v1084 = vld [vmem:[#allocation7 + $0x10] sm:$0xff]
    %v1085 = vld [vmem:[#allocation7 + $0x18] sm:$0xff]
    %v1086 = vld [vmem:[#allocation7 + $0x20] sm:$0xff]
    %v1087 = vld [vmem:[#allocation7 + $0x28] sm:$0xff]
    %v1088 = vld [vmem:[#allocation7 + $0x30] sm:$0xff]
    %v1089 = vld [vmem:[#allocation7 + $0x38] sm:$0xff]
    %v1090 = vld [vmem:[#allocation7 + $0x40] sm:$0xff]
    %v1091 = vld [vmem:[#allocation7 + $0x48] sm:$0xff]
    %v1092 = vld [vmem:[#allocation7 + $0x50] sm:$0xff]
    %v1093 = vld [vmem:[#allocation7 + $0x58] sm:$0xff]
    %v1094 = vld [vmem:[#allocation7 + $0x60] sm:$0xff]
    %v1095 = vld [vmem:[#allocation7 + $0x68] sm:$0xff]
    %v1096 = vld [vmem:[#allocation7 + $0x70] sm:$0xff]
    %v1097 = vld [vmem:[#allocation7 + $0x78] sm:$0xff]
    %vm1098 = vcmask 523264
    %v1099 = vsel %vm1098, 0.0, 0
    %1101 = vmatprep.subr.mxu0 %v1083
    %1102 = vmatpush1.msra.mxu0 %v1082
    %1103 = vmatprep.subr.mxu0 %v1085
    %1104 = vmatpush1.msra.mxu0 %v1084
    %1105 = vmatprep.subr.mxu0 %v1087
    %1106 = vmatpush1.msra.mxu0 %v1086
    %1107 = vmatprep.subr.mxu0 %v1089
    %1108 = vmatpush1.msra.mxu0 %v1088
    %1109 = vmatprep.subr.mxu0 %v1091
    %1110 = vmatpush1.msra.mxu0 %v1090
    %1111 = vmatprep.subr.mxu0 %v1093
    %1112 = vmatpush1.msra.mxu0 %v1092
    %1113 = vmatprep.subr.mxu0 %v1095
    %1114 = vmatpush1.msra.mxu0 %v1094
    %1115 = vmatprep.subr.mxu0 %v1097
    %1116 = vmatpush1.msra.mxu0 %v1096
    %1117 = vmatprep.subr.mxu0 0.0
    %1118 = vmatpush1.msra.mxu0 0.0
    %1119 = vmatprep.subr.mxu0 0.0
    %1120 = vmatpush1.msra.mxu0 0.0
    %1121 = vmatprep.subr.mxu0 0.0
    %1122 = vmatpush1.msra.mxu0 0.0
    %1123 = vmatprep.subr.mxu0 0.0
    %1124 = vmatpush1.msra.mxu0 0.0
    %1125 = vmatprep.subr.mxu0 0.0
    %1126 = vmatpush1.msra.mxu0 0.0
    %1127 = vmatprep.subr.mxu0 0.0
    %1128 = vmatpush1.msra.mxu0 0.0
    %1129 = vmatprep.subr.mxu0 0.0
    %1130 = vmatpush1.msra.mxu0 0.0
    %1131 = vmatprep.subr.mxu0 0.0
    %1132 = vmatpush1.msra.mxu0 0.0
    %1133 = vmatprep.subr.mxu0 0.0
    %1134 = vmatpush1.msra.mxu0 0.0
    %1135 = vmatprep.subr.mxu0 0.0
    %1136 = vmatpush1.msra.mxu0 0.0
    %1137 = vmatprep.subr.mxu0 0.0
    %1138 = vmatpush1.msra.mxu0 0.0
    %1139 = vmatprep.subr.mxu0 0.0
    %1140 = vmatpush1.msra.mxu0 0.0
    %1141 = vmatprep.subr.mxu0 0.0
    %1142 = vmatpush1.msra.mxu0 0.0
    %1143 = vmatprep.subr.mxu0 0.0
    %1144 = vmatpush1.msra.mxu0 0.0
    %1145 = vmatprep.subr.mxu0 0.0
    %1146 = vmatpush1.msra.mxu0 0.0
    %1147 = vmatprep.subr.mxu0 0.0
    %1148 = vmatpush1.msra.mxu0 0.0
    %1149 = vmatprep.subr.mxu0 0.0
    %1150 = vmatpush1.msra.mxu0 0.0
    %1151 = vmatprep.subr.mxu0 0.0
    %1152 = vmatpush1.msra.mxu0 0.0
    %1153 = vmatprep.subr.mxu0 0.0
    %1154 = vmatpush1.msra.mxu0 0.0
    %1155 = vmatprep.subr.mxu0 0.0
    %1156 = vmatpush1.msra.mxu0 0.0
    %1157 = vmatprep.subr.mxu0 0.0
    %1158 = vmatpush1.msra.mxu0 0.0
    %1159 = vmatprep.subr.mxu0 0.0
    %1160 = vmatpush1.msra.mxu0 0.0
    %1161 = vmatprep.subr.mxu0 0.0
    %1162 = vmatpush1.msra.mxu0 0.0
    %1163 = vmatprep.subr.mxu0 0.0
    %1164 = vmatpush1.msra.mxu0 0.0
    %1165 = vmatprep.mubr.f32.mxu0 0.0
    %1166 = vmatmul.mubr.f32.gmra.mrb[0].mxu0 %v1099
    %v1167 = vpop.f32.mrb[0].mxu0
    %v1168 = vadd.f32 0.0, %v1167
    %v1169 = vpop.f32.mrb[0].mxu0
    %v1170 = vadd.f32 0.0, %v1169
    %1171 = vdwg.mxu0
    %v1172 = vadd.f32 %v1078, %v1168
    %v1173 = vadd.f32 %v1080, %v1170
    %v1174 = vxor.u32 %v1172, 2147483648
    %v1175 = vxor.u32 %v1173, 2147483648
    %v1176 = vmul.f32 %v1174, 1.442695
    %v1177 = vpow.pop %v1176
    %v1178 = vmul.f32 %v1175, 1.442695
    %v1179 = vpow.pop %v1178
    %v1180 = vadd.f32 %v1177, 1.0
    %v1181 = vadd.f32 %v1179, 1.0
    %v1182 = vrcp.pop %v1180
    %v1183 = vmul.f32 1.0, %v1182
    %v1184 = vrcp.pop %v1181
    %v1185 = vmul.f32 1.0, %v1184
    %v1186 = vtanh.pop %v1173
    %v1187 = vmul.f32 %v1183, 0.0
    %v1188 = vmul.f32 %v1183, %v1186
    %1190 = vrot.lane.b32.xlu0 %v1188, 64
    %v1191 = vpop.permute.xlu0 %1190
    %v1193 = vadd.f32 %v1187, %v1191
    %v1194 = vtanh.pop %v1193
    %v1195 = vmul.f32 %v1185, %v1194
    %1197 = vrot.lane.b32.xlu0 %v1195, 64
    %v1198 = vpop.permute.xlu0 %1197
    %v1199 = vsel %vm1098, %v1198, 0
    %1201 = vmatprep.subr.mxu0 %v1083
    %1202 = vmatpush1.msra.mxu0 %v1082
    %1203 = vmatprep.subr.mxu0 %v1085
    %1204 = vmatpush1.msra.mxu0 %v1084
    %1205 = vmatprep.subr.mxu0 %v1087
    %1206 = vmatpush1.msra.mxu0 %v1086
    %1207 = vmatprep.subr.mxu0 %v1089
    %1208 = vmatpush1.msra.mxu0 %v1088
    %1209 = vmatprep.subr.mxu0 %v1091
    %1210 = vmatpush1.msra.mxu0 %v1090
    %1211 = vmatprep.subr.mxu0 %v1093
    %1212 = vmatpush1.msra.mxu0 %v1092
    %1213 = vmatprep.subr.mxu0 %v1095
    %1214 = vmatpush1.msra.mxu0 %v1094
    %1215 = vmatprep.subr.mxu0 %v1097
    %1216 = vmatpush1.msra.mxu0 %v1096
    %1217 = vmatprep.subr.mxu0 0.0
    %1218 = vmatpush1.msra.mxu0 0.0
    %1219 = vmatprep.subr.mxu0 0.0
    %1220 = vmatpush1.msra.mxu0 0.0
    %1221 = vmatprep.subr.mxu0 0.0
    %1222 = vmatpush1.msra.mxu0 0.0
    %1223 = vmatprep.subr.mxu0 0.0
    %1224 = vmatpush1.msra.mxu0 0.0
    %1225 = vmatprep.subr.mxu0 0.0
    %1226 = vmatpush1.msra.mxu0 0.0
    %1227 = vmatprep.subr.mxu0 0.0
    %1228 = vmatpush1.msra.mxu0 0.0
    %1229 = vmatprep.subr.mxu0 0.0
    %1230 = vmatpush1.msra.mxu0 0.0
    %1231 = vmatprep.subr.mxu0 0.0
    %1232 = vmatpush1.msra.mxu0 0.0
    %1233 = vmatprep.subr.mxu0 0.0
    %1234 = vmatpush1.msra.mxu0 0.0
    %1235 = vmatprep.subr.mxu0 0.0
    %1236 = vmatpush1.msra.mxu0 0.0
    %1237 = vmatprep.subr.mxu0 0.0
    %1238 = vmatpush1.msra.mxu0 0.0
    %1239 = vmatprep.subr.mxu0 0.0
    %1240 = vmatpush1.msra.mxu0 0.0
    %1241 = vmatprep.subr.mxu0 0.0
    %1242 = vmatpush1.msra.mxu0 0.0
    %1243 = vmatprep.subr.mxu0 0.0
    %1244 = vmatpush1.msra.mxu0 0.0
    %1245 = vmatprep.subr.mxu0 0.0
    %1246 = vmatpush1.msra.mxu0 0.0
    %1247 = vmatprep.subr.mxu0 0.0
    %1248 = vmatpush1.msra.mxu0 0.0
    %1249 = vmatprep.subr.mxu0 0.0
    %1250 = vmatpush1.msra.mxu0 0.0
    %1251 = vmatprep.subr.mxu0 0.0
    %1252 = vmatpush1.msra.mxu0 0.0
    %1253 = vmatprep.subr.mxu0 0.0
    %1254 = vmatpush1.msra.mxu0 0.0
    %1255 = vmatprep.subr.mxu0 0.0
    %1256 = vmatpush1.msra.mxu0 0.0
    %1257 = vmatprep.subr.mxu0 0.0
    %1258 = vmatpush1.msra.mxu0 0.0
    %1259 = vmatprep.subr.mxu0 0.0
    %1260 = vmatpush1.msra.mxu0 0.0
    %1261 = vmatprep.subr.mxu0 0.0
    %1262 = vmatpush1.msra.mxu0 0.0
    %1263 = vmatprep.subr.mxu0 0.0
    %1264 = vmatpush1.msra.mxu0 0.0
    %1265 = vmatprep.mubr.f32.mxu0 0.0
    %1266 = vmatmul.mubr.f32.gmra.mrb[0].mxu0 %v1199
    %v1267 = vpop.f32.mrb[0].mxu0
    %v1268 = vadd.f32 0.0, %v1267
    %v1269 = vpop.f32.mrb[0].mxu0
    %v1270 = vadd.f32 0.0, %v1269
    %1271 = vdwg.mxu0
    %v1274 = vrot.slane %v1268, 7
    %v1275 = vrot.slane %v1270, 7
    %v1278 = vadd.f32 %v1078, %v1274
    %v1279 = vadd.f32 %v1080, %v1275
    %v1280 = vxor.u32 %v1278, 2147483648
    %v1281 = vxor.u32 %v1279, 2147483648
    %v1282 = vmul.f32 %v1280, 1.442695
    %v1283 = vpow.pop %v1282
    %v1284 = vmul.f32 %v1281, 1.442695
    %v1285 = vpow.pop %v1284
    %v1286 = vadd.f32 %v1283, 1.0
    %v1287 = vadd.f32 %v1285, 1.0
    %v1288 = vrcp.pop %v1286
    %v1289 = vmul.f32 1.0, %v1288
    %v1290 = vrcp.pop %v1287
    %v1291 = vmul.f32 1.0, %v1290
    %v1292 = vtanh.pop %v1279
    %v1294 = vrot.slane %v1193, 7
    %v1296 = vmul.f32 %v1289, %v1294
    %v1297 = vmul.f32 %v1289, %v1292
    %1299 = vrot.lane.b32.xlu0 %v1297, 64
    %v1300 = vpop.permute.xlu0 %1299
    %v1302 = vadd.f32 %v1296, %v1300
    %v1303 = vtanh.pop %v1302
    %v1304 = vmul.f32 %v1291, %v1303
    %v1306 = vrot.slane %v1304, 1
    %1307 = vrot.lane.b32.xlu0 %v1306, 64
    %v1308 = vpop.permute.xlu0 %1307
    %v1309 = vsel %vm1098, %v1308, 0
    %1311 = vmatprep.subr.mxu0 %v1083
    %1312 = vmatpush1.msra.mxu0 %v1082
    %1313 = vmatprep.subr.mxu0 %v1085
    %1314 = vmatpush1.msra.mxu0 %v1084
    %1315 = vmatprep.subr.mxu0 %v1087
    %1316 = vmatpush1.msra.mxu0 %v1086
    %1317 = vmatprep.subr.mxu0 %v1089
    %1318 = vmatpush1.msra.mxu0 %v1088
    %1319 = vmatprep.subr.mxu0 %v1091
    %1320 = vmatpush1.msra.mxu0 %v1090
    %1321 = vmatprep.subr.mxu0 %v1093
    %1322 = vmatpush1.msra.mxu0 %v1092
    %1323 = vmatprep.subr.mxu0 %v1095
    %1324 = vmatpush1.msra.mxu0 %v1094
    %1325 = vmatprep.subr.mxu0 %v1097
    %1326 = vmatpush1.msra.mxu0 %v1096
    %1327 = vmatprep.subr.mxu0 0.0
    %1328 = vmatpush1.msra.mxu0 0.0
    %1329 = vmatprep.subr.mxu0 0.0
    %1330 = vmatpush1.msra.mxu0 0.0
    %1331 = vmatprep.subr.mxu0 0.0
    %1332 = vmatpush1.msra.mxu0 0.0
    %1333 = vmatprep.subr.mxu0 0.0
    %1334 = vmatpush1.msra.mxu0 0.0
    %1335 = vmatprep.subr.mxu0 0.0
    %1336 = vmatpush1.msra.mxu0 0.0
    %1337 = vmatprep.subr.mxu0 0.0
    %1338 = vmatpush1.msra.mxu0 0.0
    %1339 = vmatprep.subr.mxu0 0.0
    %1340 = vmatpush1.msra.mxu0 0.0
    %1341 = vmatprep.subr.mxu0 0.0
    %1342 = vmatpush1.msra.mxu0 0.0
    %1343 = vmatprep.subr.mxu0 0.0
    %1344 = vmatpush1.msra.mxu0 0.0
    %1345 = vmatprep.subr.mxu0 0.0
    %1346 = vmatpush1.msra.mxu0 0.0
    %1347 = vmatprep.subr.mxu0 0.0
    %1348 = vmatpush1.msra.mxu0 0.0
    %1349 = vmatprep.subr.mxu0 0.0
    %1350 = vmatpush1.msra.mxu0 0.0
    %1351 = vmatprep.subr.mxu0 0.0
    %1352 = vmatpush1.msra.mxu0 0.0
    %1353 = vmatprep.subr.mxu0 0.0
    %1354 = vmatpush1.msra.mxu0 0.0
    %1355 = vmatprep.subr.mxu0 0.0
    %1356 = vmatpush1.msra.mxu0 0.0
    %1357 = vmatprep.subr.mxu0 0.0
    %1358 = vmatpush1.msra.mxu0 0.0
    %1359 = vmatprep.subr.mxu0 0.0
    %1360 = vmatpush1.msra.mxu0 0.0
    %1361 = vmatprep.subr.mxu0 0.0
    %1362 = vmatpush1.msra.mxu0 0.0
    %1363 = vmatprep.subr.mxu0 0.0
    %1364 = vmatpush1.msra.mxu0 0.0
    %1365 = vmatprep.subr.mxu0 0.0
    %1366 = vmatpush1.msra.mxu0 0.0
    %1367 = vmatprep.subr.mxu0 0.0
    %1368 = vmatpush1.msra.mxu0 0.0
    %1369 = vmatprep.subr.mxu0 0.0
    %1370 = vmatpush1.msra.mxu0 0.0
    %1371 = vmatprep.subr.mxu0 0.0
    %1372 = vmatpush1.msra.mxu0 0.0
    %1373 = vmatprep.subr.mxu0 0.0
    %1374 = vmatpush1.msra.mxu0 0.0
    %1375 = vmatprep.mubr.f32.mxu0 0.0
    %1376 = vmatmul.mubr.f32.gmra.mrb[0].mxu0 %v1309
    %v1377 = vpop.f32.mrb[0].mxu0
    %v1378 = vadd.f32 0.0, %v1377
    %v1379 = vpop.f32.mrb[0].mxu0
    %v1380 = vadd.f32 0.0, %v1379
    %1381 = vdwg.mxu0
    %v1384 = vrot.slane %v1378, 6
    %v1385 = vrot.slane %v1380, 6
    %v1388 = vadd.f32 %v1078, %v1384
    %v1389 = vadd.f32 %v1080, %v1385
    %v1390 = vxor.u32 %v1388, 2147483648
    %v1391 = vxor.u32 %v1389, 2147483648
    %v1392 = vmul.f32 %v1390, 1.442695
    %v1393 = vpow.pop %v1392
    %v1394 = vmul.f32 %v1391, 1.442695
    %v1395 = vpow.pop %v1394
    %v1396 = vadd.f32 %v1393, 1.0
    %v1397 = vadd.f32 %v1395, 1.0
    %v1398 = vrcp.pop %v1396
    %v1399 = vmul.f32 1.0, %v1398
    %v1400 = vrcp.pop %v1397
    %v1401 = vmul.f32 1.0, %v1400
    %v1402 = vtanh.pop %v1389
    %v1404 = vrot.slane %v1302, 7
    %v1406 = vmul.f32 %v1399, %v1404
    %v1407 = vmul.f32 %v1399, %v1402
    %1409 = vrot.lane.b32.xlu0 %v1407, 64
    %v1410 = vpop.permute.xlu0 %1409
    %v1412 = vadd.f32 %v1406, %v1410
    %v1413 = vtanh.pop %v1412
    %v1414 = vmul.f32 %v1401, %v1413
    %v1416 = vrot.slane %v1414, 2
    %1417 = vrot.lane.b32.xlu0 %v1416, 64
    %v1418 = vpop.permute.xlu0 %1417
    %v1419 = vsel %vm1098, %v1418, 0
    %1421 = vmatprep.subr.mxu0 %v1083
    %1422 = vmatpush1.msra.mxu0 %v1082
    %1423 = vmatprep.subr.mxu0 %v1085
    %1424 = vmatpush1.msra.mxu0 %v1084
    %1425 = vmatprep.subr.mxu0 %v1087
    %1426 = vmatpush1.msra.mxu0 %v1086
    %1427 = vmatprep.subr.mxu0 %v1089
    %1428 = vmatpush1.msra.mxu0 %v1088
    %1429 = vmatprep.subr.mxu0 %v1091
    %1430 = vmatpush1.msra.mxu0 %v1090
    %1431 = vmatprep.subr.mxu0 %v1093
    %1432 = vmatpush1.msra.mxu0 %v1092
    %1433 = vmatprep.subr.mxu0 %v1095
    %1434 = vmatpush1.msra.mxu0 %v1094
    %1435 = vmatprep.subr.mxu0 %v1097
    %1436 = vmatpush1.msra.mxu0 %v1096
    %1437 = vmatprep.subr.mxu0 0.0
    %1438 = vmatpush1.msra.mxu0 0.0
    %1439 = vmatprep.subr.mxu0 0.0
    %1440 = vmatpush1.msra.mxu0 0.0
    %1441 = vmatprep.subr.mxu0 0.0
    %1442 = vmatpush1.msra.mxu0 0.0
    %1443 = vmatprep.subr.mxu0 0.0
    %1444 = vmatpush1.msra.mxu0 0.0
    %1445 = vmatprep.subr.mxu0 0.0
    %1446 = vmatpush1.msra.mxu0 0.0
    %1447 = vmatprep.subr.mxu0 0.0
    %1448 = vmatpush1.msra.mxu0 0.0
    %1449 = vmatprep.subr.mxu0 0.0
    %1450 = vmatpush1.msra.mxu0 0.0
    %1451 = vmatprep.subr.mxu0 0.0
    %1452 = vmatpush1.msra.mxu0 0.0
    %1453 = vmatprep.subr.mxu0 0.0
    %1454 = vmatpush1.msra.mxu0 0.0
    %1455 = vmatprep.subr.mxu0 0.0
    %1456 = vmatpush1.msra.mxu0 0.0
    %1457 = vmatprep.subr.mxu0 0.0
    %1458 = vmatpush1.msra.mxu0 0.0
    %1459 = vmatprep.subr.mxu0 0.0
    %1460 = vmatpush1.msra.mxu0 0.0
    %1461 = vmatprep.subr.mxu0 0.0
    %1462 = vmatpush1.msra.mxu0 0.0
    %1463 = vmatprep.subr.mxu0 0.0
    %1464 = vmatpush1.msra.mxu0 0.0
    %1465 = vmatprep.subr.mxu0 0.0
    %1466 = vmatpush1.msra.mxu0 0.0
    %1467 = vmatprep.subr.mxu0 0.0
    %1468 = vmatpush1.msra.mxu0 0.0
    %1469 = vmatprep.subr.mxu0 0.0
    %1470 = vmatpush1.msra.mxu0 0.0
    %1471 = vmatprep.subr.mxu0 0.0
    %1472 = vmatpush1.msra.mxu0 0.0
    %1473 = vmatprep.subr.mxu0 0.0
    %1474 = vmatpush1.msra.mxu0 0.0
    %1475 = vmatprep.subr.mxu0 0.0
    %1476 = vmatpush1.msra.mxu0 0.0
    %1477 = vmatprep.subr.mxu0 0.0
    %1478 = vmatpush1.msra.mxu0 0.0
    %1479 = vmatprep.subr.mxu0 0.0
    %1480 = vmatpush1.msra.mxu0 0.0
    %1481 = vmatprep.subr.mxu0 0.0
    %1482 = vmatpush1.msra.mxu0 0.0
    %1483 = vmatprep.subr.mxu0 0.0
    %1484 = vmatpush1.msra.mxu0 0.0
    %1485 = vmatprep.mubr.f32.mxu0 0.0
    %1486 = vmatmul.mubr.f32.gmra.mrb[0].mxu0 %v1419
    %v1487 = vpop.f32.mrb[0].mxu0
    %v1488 = vadd.f32 0.0, %v1487
    %v1489 = vpop.f32.mrb[0].mxu0
    %v1490 = vadd.f32 0.0, %v1489
    %1491 = vdwg.mxu0
    %v1494 = vrot.slane %v1488, 5
    %v1495 = vrot.slane %v1490, 5
    %v1498 = vadd.f32 %v1078, %v1494
    %v1499 = vadd.f32 %v1080, %v1495
    %v1500 = vxor.u32 %v1498, 2147483648
    %v1501 = vxor.u32 %v1499, 2147483648
    %v1502 = vmul.f32 %v1500, 1.442695
    %v1503 = vpow.pop %v1502
    %v1504 = vmul.f32 %v1501, 1.442695
    %v1505 = vpow.pop %v1504
    %v1506 = vadd.f32 %v1503, 1.0
    %v1507 = vadd.f32 %v1505, 1.0
    %v1508 = vrcp.pop %v1506
    %v1509 = vmul.f32 1.0, %v1508
    %v1510 = vrcp.pop %v1507
    %v1511 = vmul.f32 1.0, %v1510
    %v1512 = vtanh.pop %v1499
    %v1514 = vrot.slane %v1412, 7
    %v1516 = vmul.f32 %v1509, %v1514
    %v1517 = vmul.f32 %v1509, %v1512
    %1519 = vrot.lane.b32.xlu0 %v1517, 64
    %v1520 = vpop.permute.xlu0 %1519
    %v1522 = vadd.f32 %v1516, %v1520
    %v1523 = vtanh.pop %v1522
    %v1524 = vmul.f32 %v1511, %v1523
    %v1526 = vrot.slane %v1524, 3
    %1527 = vrot.lane.b32.xlu0 %v1526, 64
    %v1528 = vpop.permute.xlu0 %1527
    %v1529 = vsel %vm1098, %v1528, 0
    %1531 = vmatprep.subr.mxu0 %v1083
    %1532 = vmatpush1.msra.mxu0 %v1082
    %1533 = vmatprep.subr.mxu0 %v1085
    %1534 = vmatpush1.msra.mxu0 %v1084
    %1535 = vmatprep.subr.mxu0 %v1087
    %1536 = vmatpush1.msra.mxu0 %v1086
    %1537 = vmatprep.subr.mxu0 %v1089
    %1538 = vmatpush1.msra.mxu0 %v1088
    %1539 = vmatprep.subr.mxu0 %v1091
    %1540 = vmatpush1.msra.mxu0 %v1090
    %1541 = vmatprep.subr.mxu0 %v1093
    %1542 = vmatpush1.msra.mxu0 %v1092
    %1543 = vmatprep.subr.mxu0 %v1095
    %1544 = vmatpush1.msra.mxu0 %v1094
    %1545 = vmatprep.subr.mxu0 %v1097
    %1546 = vmatpush1.msra.mxu0 %v1096
    %1547 = vmatprep.subr.mxu0 0.0
    %1548 = vmatpush1.msra.mxu0 0.0
    %1549 = vmatprep.subr.mxu0 0.0
    %1550 = vmatpush1.msra.mxu0 0.0
    %1551 = vmatprep.subr.mxu0 0.0
    %1552 = vmatpush1.msra.mxu0 0.0
    %1553 = vmatprep.subr.mxu0 0.0
    %1554 = vmatpush1.msra.mxu0 0.0
    %1555 = vmatprep.subr.mxu0 0.0
    %1556 = vmatpush1.msra.mxu0 0.0
    %1557 = vmatprep.subr.mxu0 0.0
    %1558 = vmatpush1.msra.mxu0 0.0
    %1559 = vmatprep.subr.mxu0 0.0
    %1560 = vmatpush1.msra.mxu0 0.0
    %1561 = vmatprep.subr.mxu0 0.0
    %1562 = vmatpush1.msra.mxu0 0.0
    %1563 = vmatprep.subr.mxu0 0.0
    %1564 = vmatpush1.msra.mxu0 0.0
    %1565 = vmatprep.subr.mxu0 0.0
    %1566 = vmatpush1.msra.mxu0 0.0
    %1567 = vmatprep.subr.mxu0 0.0
    %1568 = vmatpush1.msra.mxu0 0.0
    %1569 = vmatprep.subr.mxu0 0.0
    %1570 = vmatpush1.msra.mxu0 0.0
    %1571 = vmatprep.subr.mxu0 0.0
    %1572 = vmatpush1.msra.mxu0 0.0
    %1573 = vmatprep.subr.mxu0 0.0
    %1574 = vmatpush1.msra.mxu0 0.0
    %1575 = vmatprep.subr.mxu0 0.0
    %1576 = vmatpush1.msra.mxu0 0.0
    %1577 = vmatprep.subr.mxu0 0.0
    %1578 = vmatpush1.msra.mxu0 0.0
    %1579 = vmatprep.subr.mxu0 0.0
    %1580 = vmatpush1.msra.mxu0 0.0
    %1581 = vmatprep.subr.mxu0 0.0
    %1582 = vmatpush1.msra.mxu0 0.0
    %1583 = vmatprep.subr.mxu0 0.0
    %1584 = vmatpush1.msra.mxu0 0.0
    %1585 = vmatprep.subr.mxu0 0.0
    %1586 = vmatpush1.msra.mxu0 0.0
    %1587 = vmatprep.subr.mxu0 0.0
    %1588 = vmatpush1.msra.mxu0 0.0
    %1589 = vmatprep.subr.mxu0 0.0
    %1590 = vmatpush1.msra.mxu0 0.0
    %1591 = vmatprep.subr.mxu0 0.0
    %1592 = vmatpush1.msra.mxu0 0.0
    %1593 = vmatprep.subr.mxu0 0.0
    %1594 = vmatpush1.msra.mxu0 0.0
    %1595 = vmatprep.mubr.f32.mxu0 0.0
    %1596 = vmatmul.mubr.f32.gmra.mrb[0].mxu0 %v1529
    %v1597 = vpop.f32.mrb[0].mxu0
    %v1598 = vadd.f32 0.0, %v1597
    %v1599 = vpop.f32.mrb[0].mxu0
    %v1600 = vadd.f32 0.0, %v1599
    %1601 = vdwg.mxu0
    %v1604 = vrot.slane %v1598, 4
    %v1605 = vrot.slane %v1600, 4
    %v1608 = vadd.f32 %v1078, %v1604
    %v1609 = vadd.f32 %v1080, %v1605
    %v1610 = vxor.u32 %v1608, 2147483648
    %v1611 = vxor.u32 %v1609, 2147483648
    %v1612 = vmul.f32 %v1610, 1.442695
    %v1613 = vpow.pop %v1612
    %v1614 = vmul.f32 %v1611, 1.442695
    %v1615 = vpow.pop %v1614
    %v1616 = vadd.f32 %v1613, 1.0
    %v1617 = vadd.f32 %v1615, 1.0
    %v1618 = vrcp.pop %v1616
    %v1619 = vmul.f32 1.0, %v1618
    %v1620 = vrcp.pop %v1617
    %v1621 = vmul.f32 1.0, %v1620
    %v1622 = vtanh.pop %v1609
    %v1624 = vrot.slane %v1522, 7
    %v1626 = vmul.f32 %v1619, %v1624
    %v1627 = vmul.f32 %v1619, %v1622
    %1629 = vrot.lane.b32.xlu0 %v1627, 64
    %v1630 = vpop.permute.xlu0 %1629
    %v1632 = vadd.f32 %v1626, %v1630
    %v1633 = vtanh.pop %v1632
    %v1634 = vmul.f32 %v1621, %v1633
    %v1636 = vrot.slane %v1634, 4
    %1637 = vrot.lane.b32.xlu0 %v1636, 64
    %v1638 = vpop.permute.xlu0 %1637
    %v1639 = vsel %vm1098, %v1638, 0
    %1641 = vmatprep.subr.mxu0 %v1083
    %1642 = vmatpush1.msra.mxu0 %v1082
    %1643 = vmatprep.subr.mxu0 %v1085
    %1644 = vmatpush1.msra.mxu0 %v1084
    %1645 = vmatprep.subr.mxu0 %v1087
    %1646 = vmatpush1.msra.mxu0 %v1086
    %1647 = vmatprep.subr.mxu0 %v1089
    %1648 = vmatpush1.msra.mxu0 %v1088
    %1649 = vmatprep.subr.mxu0 %v1091
    %1650 = vmatpush1.msra.mxu0 %v1090
    %1651 = vmatprep.subr.mxu0 %v1093
    %1652 = vmatpush1.msra.mxu0 %v1092
    %1653 = vmatprep.subr.mxu0 %v1095
    %1654 = vmatpush1.msra.mxu0 %v1094
    %1655 = vmatprep.subr.mxu0 %v1097
    %1656 = vmatpush1.msra.mxu0 %v1096
    %1657 = vmatprep.subr.mxu0 0.0
    %1658 = vmatpush1.msra.mxu0 0.0
    %1659 = vmatprep.subr.mxu0 0.0
    %1660 = vmatpush1.msra.mxu0 0.0
    %1661 = vmatprep.subr.mxu0 0.0
    %1662 = vmatpush1.msra.mxu0 0.0
    %1663 = vmatprep.subr.mxu0 0.0
    %1664 = vmatpush1.msra.mxu0 0.0
    %1665 = vmatprep.subr.mxu0 0.0
    %1666 = vmatpush1.msra.mxu0 0.0
    %1667 = vmatprep.subr.mxu0 0.0
    %1668 = vmatpush1.msra.mxu0 0.0
    %1669 = vmatprep.subr.mxu0 0.0
    %1670 = vmatpush1.msra.mxu0 0.0
    %1671 = vmatprep.subr.mxu0 0.0
    %1672 = vmatpush1.msra.mxu0 0.0
    %1673 = vmatprep.subr.mxu0 0.0
    %1674 = vmatpush1.msra.mxu0 0.0
    %1675 = vmatprep.subr.mxu0 0.0
    %1676 = vmatpush1.msra.mxu0 0.0
    %1677 = vmatprep.subr.mxu0 0.0
    %1678 = vmatpush1.msra.mxu0 0.0
    %1679 = vmatprep.subr.mxu0 0.0
    %1680 = vmatpush1.msra.mxu0 0.0
    %1681 = vmatprep.subr.mxu0 0.0
    %1682 = vmatpush1.msra.mxu0 0.0
    %1683 = vmatprep.subr.mxu0 0.0
    %1684 = vmatpush1.msra.mxu0 0.0
    %1685 = vmatprep.subr.mxu0 0.0
    %1686 = vmatpush1.msra.mxu0 0.0
    %1687 = vmatprep.subr.mxu0 0.0
    %1688 = vmatpush1.msra.mxu0 0.0
    %1689 = vmatprep.subr.mxu0 0.0
    %1690 = vmatpush1.msra.mxu0 0.0
    %1691 = vmatprep.subr.mxu0 0.0
    %1692 = vmatpush1.msra.mxu0 0.0
    %1693 = vmatprep.subr.mxu0 0.0
    %1694 = vmatpush1.msra.mxu0 0.0
    %1695 = vmatprep.subr.mxu0 0.0
    %1696 = vmatpush1.msra.mxu0 0.0
    %1697 = vmatprep.subr.mxu0 0.0
    %1698 = vmatpush1.msra.mxu0 0.0
    %1699 = vmatprep.subr.mxu0 0.0
    %1700 = vmatpush1.msra.mxu0 0.0
    %1701 = vmatprep.subr.mxu0 0.0
    %1702 = vmatpush1.msra.mxu0 0.0
    %1703 = vmatprep.subr.mxu0 0.0
    %1704 = vmatpush1.msra.mxu0 0.0
    %1705 = vmatprep.mubr.f32.mxu0 0.0
    %1706 = vmatmul.mubr.f32.gmra.mrb[0].mxu0 %v1639
    %v1707 = vpop.f32.mrb[0].mxu0
    %v1708 = vadd.f32 0.0, %v1707
    %v1709 = vpop.f32.mrb[0].mxu0
    %v1710 = vadd.f32 0.0, %v1709
    %1711 = vdwg.mxu0
    %v1714 = vrot.slane %v1708, 3
    %v1715 = vrot.slane %v1710, 3
    %v1718 = vadd.f32 %v1078, %v1714
    %v1719 = vadd.f32 %v1080, %v1715
    %v1720 = vxor.u32 %v1718, 2147483648
    %v1721 = vxor.u32 %v1719, 2147483648
    %v1722 = vmul.f32 %v1720, 1.442695
    %v1723 = vpow.pop %v1722
    %v1724 = vmul.f32 %v1721, 1.442695
    %v1725 = vpow.pop %v1724
    %v1726 = vadd.f32 %v1723, 1.0
    %v1727 = vadd.f32 %v1725, 1.0
    %v1728 = vrcp.pop %v1726
    %v1729 = vmul.f32 1.0, %v1728
    %v1730 = vrcp.pop %v1727
    %v1731 = vmul.f32 1.0, %v1730
    %v1732 = vtanh.pop %v1719
    %v1734 = vrot.slane %v1632, 7
    %v1736 = vmul.f32 %v1729, %v1734
    %v1737 = vmul.f32 %v1729, %v1732
    %1739 = vrot.lane.b32.xlu0 %v1737, 64
    %v1740 = vpop.permute.xlu0 %1739
    %v1742 = vadd.f32 %v1736, %v1740
    %v1743 = vtanh.pop %v1742
    %v1744 = vmul.f32 %v1731, %v1743
    %v1746 = vrot.slane %v1744, 5
    %1747 = vrot.lane.b32.xlu0 %v1746, 64
    %v1748 = vpop.permute.xlu0 %1747
    %v1749 = vsel %vm1098, %v1748, 0
    %1751 = vmatprep.subr.mxu0 %v1083
    %1752 = vmatpush1.msra.mxu0 %v1082
    %1753 = vmatprep.subr.mxu0 %v1085
    %1754 = vmatpush1.msra.mxu0 %v1084
    %1755 = vmatprep.subr.mxu0 %v1087
    %1756 = vmatpush1.msra.mxu0 %v1086
    %1757 = vmatprep.subr.mxu0 %v1089
    %1758 = vmatpush1.msra.mxu0 %v1088
    %1759 = vmatprep.subr.mxu0 %v1091
    %1760 = vmatpush1.msra.mxu0 %v1090
    %1761 = vmatprep.subr.mxu0 %v1093
    %1762 = vmatpush1.msra.mxu0 %v1092
    %1763 = vmatprep.subr.mxu0 %v1095
    %1764 = vmatpush1.msra.mxu0 %v1094
    %1765 = vmatprep.subr.mxu0 %v1097
    %1766 = vmatpush1.msra.mxu0 %v1096
    %1767 = vmatprep.subr.mxu0 0.0
    %1768 = vmatpush1.msra.mxu0 0.0
    %1769 = vmatprep.subr.mxu0 0.0
    %1770 = vmatpush1.msra.mxu0 0.0
    %1771 = vmatprep.subr.mxu0 0.0
    %1772 = vmatpush1.msra.mxu0 0.0
    %1773 = vmatprep.subr.mxu0 0.0
    %1774 = vmatpush1.msra.mxu0 0.0
    %1775 = vmatprep.subr.mxu0 0.0
    %1776 = vmatpush1.msra.mxu0 0.0
    %1777 = vmatprep.subr.mxu0 0.0
    %1778 = vmatpush1.msra.mxu0 0.0
    %1779 = vmatprep.subr.mxu0 0.0
    %1780 = vmatpush1.msra.mxu0 0.0
    %1781 = vmatprep.subr.mxu0 0.0
    %1782 = vmatpush1.msra.mxu0 0.0
    %1783 = vmatprep.subr.mxu0 0.0
    %1784 = vmatpush1.msra.mxu0 0.0
    %1785 = vmatprep.subr.mxu0 0.0
    %1786 = vmatpush1.msra.mxu0 0.0
    %1787 = vmatprep.subr.mxu0 0.0
    %1788 = vmatpush1.msra.mxu0 0.0
    %1789 = vmatprep.subr.mxu0 0.0
    %1790 = vmatpush1.msra.mxu0 0.0
    %1791 = vmatprep.subr.mxu0 0.0
    %1792 = vmatpush1.msra.mxu0 0.0
    %1793 = vmatprep.subr.mxu0 0.0
    %1794 = vmatpush1.msra.mxu0 0.0
    %1795 = vmatprep.subr.mxu0 0.0
    %1796 = vmatpush1.msra.mxu0 0.0
    %1797 = vmatprep.subr.mxu0 0.0
    %1798 = vmatpush1.msra.mxu0 0.0
    %1799 = vmatprep.subr.mxu0 0.0
    %1800 = vmatpush1.msra.mxu0 0.0
    %1801 = vmatprep.subr.mxu0 0.0
    %1802 = vmatpush1.msra.mxu0 0.0
    %1803 = vmatprep.subr.mxu0 0.0
    %1804 = vmatpush1.msra.mxu0 0.0
    %1805 = vmatprep.subr.mxu0 0.0
    %1806 = vmatpush1.msra.mxu0 0.0
    %1807 = vmatprep.subr.mxu0 0.0
    %1808 = vmatpush1.msra.mxu0 0.0
    %1809 = vmatprep.subr.mxu0 0.0
    %1810 = vmatpush1.msra.mxu0 0.0
    %1811 = vmatprep.subr.mxu0 0.0
    %1812 = vmatpush1.msra.mxu0 0.0
    %1813 = vmatprep.subr.mxu0 0.0
    %1814 = vmatpush1.msra.mxu0 0.0
    %1815 = vmatprep.mubr.f32.mxu0 0.0
    %1816 = vmatmul.mubr.f32.gmra.mrb[0].mxu0 %v1749
    %v1817 = vpop.f32.mrb[0].mxu0
    %v1818 = vadd.f32 0.0, %v1817
    %v1819 = vpop.f32.mrb[0].mxu0
    %v1820 = vadd.f32 0.0, %v1819
    %1821 = vdwg.mxu0
    %v1824 = vrot.slane %v1818, 2
    %v1825 = vrot.slane %v1820, 2
    %v1828 = vadd.f32 %v1078, %v1824
    %v1829 = vadd.f32 %v1080, %v1825
    %v1830 = vxor.u32 %v1828, 2147483648
    %v1831 = vxor.u32 %v1829, 2147483648
    %v1832 = vmul.f32 %v1830, 1.442695
    %v1833 = vpow.pop %v1832
    %v1834 = vmul.f32 %v1831, 1.442695
    %v1835 = vpow.pop %v1834
    %v1836 = vadd.f32 %v1833, 1.0
    %v1837 = vadd.f32 %v1835, 1.0
    %v1838 = vrcp.pop %v1836
    %v1839 = vmul.f32 1.0, %v1838
    %v1840 = vrcp.pop %v1837
    %v1841 = vmul.f32 1.0, %v1840
    %v1842 = vtanh.pop %v1829
    %v1844 = vrot.slane %v1742, 7
    %v1846 = vmul.f32 %v1839, %v1844
    %v1847 = vmul.f32 %v1839, %v1842
    %1849 = vrot.lane.b32.xlu0 %v1847, 64
    %v1850 = vpop.permute.xlu0 %1849
    %v1852 = vadd.f32 %v1846, %v1850
    %v1853 = vtanh.pop %v1852
    %v1854 = vmul.f32 %v1841, %v1853
    %v1856 = vrot.slane %v1854, 6
    %1857 = vrot.lane.b32.xlu0 %v1856, 64
    %v1858 = vpop.permute.xlu0 %1857
    %v1859 = vsel %vm1098, %v1858, 0
    %1861 = vmatprep.subr.mxu0 %v1083
    %1862 = vmatpush1.msra.mxu0 %v1082
    %1863 = vmatprep.subr.mxu0 %v1085
    %1864 = vmatpush1.msra.mxu0 %v1084
    %1865 = vmatprep.subr.mxu0 %v1087
    %1866 = vmatpush1.msra.mxu0 %v1086
    %1867 = vmatprep.subr.mxu0 %v1089
    %1868 = vmatpush1.msra.mxu0 %v1088
    %1869 = vmatprep.subr.mxu0 %v1091
    %1870 = vmatpush1.msra.mxu0 %v1090
    %1871 = vmatprep.subr.mxu0 %v1093
    %1872 = vmatpush1.msra.mxu0 %v1092
    %1873 = vmatprep.subr.mxu0 %v1095
    %1874 = vmatpush1.msra.mxu0 %v1094
    %1875 = vmatprep.subr.mxu0 %v1097
    %1876 = vmatpush1.msra.mxu0 %v1096
    %1877 = vmatprep.subr.mxu0 0.0
    %1878 = vmatpush1.msra.mxu0 0.0
    %1879 = vmatprep.subr.mxu0 0.0
    %1880 = vmatpush1.msra.mxu0 0.0
    %1881 = vmatprep.subr.mxu0 0.0
    %1882 = vmatpush1.msra.mxu0 0.0
    %1883 = vmatprep.subr.mxu0 0.0
    %1884 = vmatpush1.msra.mxu0 0.0
    %1885 = vmatprep.subr.mxu0 0.0
    %1886 = vmatpush1.msra.mxu0 0.0
    %1887 = vmatprep.subr.mxu0 0.0
    %1888 = vmatpush1.msra.mxu0 0.0
    %1889 = vmatprep.subr.mxu0 0.0
    %1890 = vmatpush1.msra.mxu0 0.0
    %1891 = vmatprep.subr.mxu0 0.0
    %1892 = vmatpush1.msra.mxu0 0.0
    %1893 = vmatprep.subr.mxu0 0.0
    %1894 = vmatpush1.msra.mxu0 0.0
    %1895 = vmatprep.subr.mxu0 0.0
    %1896 = vmatpush1.msra.mxu0 0.0
    %1897 = vmatprep.subr.mxu0 0.0
    %1898 = vmatpush1.msra.mxu0 0.0
    %1899 = vmatprep.subr.mxu0 0.0
    %1900 = vmatpush1.msra.mxu0 0.0
    %1901 = vmatprep.subr.mxu0 0.0
    %1902 = vmatpush1.msra.mxu0 0.0
    %1903 = vmatprep.subr.mxu0 0.0
    %1904 = vmatpush1.msra.mxu0 0.0
    %1905 = vmatprep.subr.mxu0 0.0
    %1906 = vmatpush1.msra.mxu0 0.0
    %1907 = vmatprep.subr.mxu0 0.0
    %1908 = vmatpush1.msra.mxu0 0.0
    %1909 = vmatprep.subr.mxu0 0.0
    %1910 = vmatpush1.msra.mxu0 0.0
    %1911 = vmatprep.subr.mxu0 0.0
    %1912 = vmatpush1.msra.mxu0 0.0
    %1913 = vmatprep.subr.mxu0 0.0
    %1914 = vmatpush1.msra.mxu0 0.0
    %1915 = vmatprep.subr.mxu0 0.0
    %1916 = vmatpush1.msra.mxu0 0.0
    %1917 = vmatprep.subr.mxu0 0.0
    %1918 = vmatpush1.msra.mxu0 0.0
    %1919 = vmatprep.subr.mxu0 0.0
    %1920 = vmatpush1.msra.mxu0 0.0
    %1921 = vmatprep.subr.mxu0 0.0
    %1922 = vmatpush1.msra.mxu0 0.0
    %1923 = vmatprep.subr.mxu0 0.0
    %1924 = vmatpush1.msra.mxu0 0.0
    %1925 = vmatprep.mubr.f32.mxu0 0.0
    %1926 = vmatmul.mubr.f32.gmra.mrb[0].mxu0 %v1859
    %v1927 = vpop.f32.mrb[0].mxu0
    %v1928 = vadd.f32 0.0, %v1927
    %v1929 = vpop.f32.mrb[0].mxu0
    %v1930 = vadd.f32 0.0, %v1929
    %1931 = vdwg.mxu0
    %v1934 = vrot.slane %v1928, 1
    %v1935 = vrot.slane %v1930, 1
    %v1938 = vadd.f32 %v1078, %v1934
    %v1939 = vadd.f32 %v1080, %v1935
    %v1940 = vxor.u32 %v1938, 2147483648
    %v1941 = vxor.u32 %v1939, 2147483648
    %v1942 = vmul.f32 %v1940, 1.442695
    %v1943 = vpow.pop %v1942
    %v1944 = vmul.f32 %v1941, 1.442695
    %v1945 = vpow.pop %v1944
    %v1946 = vadd.f32 %v1943, 1.0
    %v1947 = vadd.f32 %v1945, 1.0
    %v1948 = vrcp.pop %v1946
    %v1949 = vmul.f32 1.0, %v1948
    %v1950 = vrcp.pop %v1947
    %v1951 = vmul.f32 1.0, %v1950
    %v1952 = vtanh.pop %v1939
    %v1954 = vrot.slane %v1852, 7
    %v1956 = vmul.f32 %v1949, %v1954
    %v1957 = vmul.f32 %v1949, %v1952
    %1959 = vrot.lane.b32.xlu0 %v1957, 64
    %v1960 = vpop.permute.xlu0 %1959
    %v1962 = vadd.f32 %v1956, %v1960
    %v1963 = vtanh.pop %v1962
    %v1964 = vmul.f32 %v1951, %v1963
    %v1965 = vsel %vm972, %v1195, %v1304
    %v1966 = vsel %vm974, %v1965, %v1414
    %v1967 = vsel %vm976, %v1966, %v1524
    %v1968 = vsel %vm978, %v1967, %v1634
    %v1969 = vsel %vm980, %v1968, %v1744
    %v1970 = vsel %vm982, %v1969, %v1854
    %v1971 = vsel %vm984, %v1970, %v1964
    %v1972 = vld [vmem:[%s7] sm:$0xff]
    %v1973 = vld [vmem:[%s7 + $0x8] sm:$0xff]
    %v1974 = vld [vmem:[%s7 + $0x10] sm:$0xff]
    %v1975 = vld [vmem:[%s7 + $0x18] sm:$0xff]
    %v1976 = vld [vmem:[%s7 + $0x20] sm:$0xff]
    %v1977 = vld [vmem:[%s7 + $0x28] sm:$0xff]
    %v1978 = vld [vmem:[%s7 + $0x30] sm:$0xff]
    %v1979 = vld [vmem:[%s7 + $0x38] sm:$0xff]
    %v1980 = vld [vmem:[#allocation2] sm:$0x1]
    %v1982 = vlaneseq
    %v1983 = vshrl.u32 %v1982, 7
    %v1984 = vsub.s32 0, %v1983
    %v1985 = vrot.slane %v1980, %v1984
    %1988 = vrot.lane.b32.xlu0 %v1971, 64
    %v1989 = vpop.permute.xlu0 %1988
    %v1990 = vsel %vm1098, %v1989, 0
    %1992 = vmatprep.subr.mxu0 0.0
    %1993 = vmatpush1.msra.mxu0 %v1972
    %1994 = vmatprep.subr.mxu0 0.0
    %1995 = vmatpush1.msra.mxu0 %v1973
    %1996 = vmatprep.subr.mxu0 0.0
    %1997 = vmatpush1.msra.mxu0 %v1974
    %1998 = vmatprep.subr.mxu0 0.0
    %1999 = vmatpush1.msra.mxu0 %v1975
    %2000 = vmatprep.subr.mxu0 0.0
    %2001 = vmatpush1.msra.mxu0 %v1976
    %2002 = vmatprep.subr.mxu0 0.0
    %2003 = vmatpush1.msra.mxu0 %v1977
    %2004 = vmatprep.subr.mxu0 0.0
    %2005 = vmatpush1.msra.mxu0 %v1978
    %2006 = vmatprep.subr.mxu0 0.0
    %2007 = vmatpush1.msra.mxu0 %v1979
    %2008 = vmatprep.subr.mxu0 0.0
    %2009 = vmatpush1.msra.mxu0 0.0
    %2010 = vmatprep.subr.mxu0 0.0
    %2011 = vmatpush1.msra.mxu0 0.0
    %2012 = vmatprep.subr.mxu0 0.0
    %2013 = vmatpush1.msra.mxu0 0.0
    %2014 = vmatprep.subr.mxu0 0.0
    %2015 = vmatpush1.msra.mxu0 0.0
    %2016 = vmatprep.subr.mxu0 0.0
    %2017 = vmatpush1.msra.mxu0 0.0
    %2018 = vmatprep.subr.mxu0 0.0
    %2019 = vmatpush1.msra.mxu0 0.0
    %2020 = vmatprep.subr.mxu0 0.0
    %2021 = vmatpush1.msra.mxu0 0.0
    %2022 = vmatprep.subr.mxu0 0.0
    %2023 = vmatpush1.msra.mxu0 0.0
    %2024 = vmatprep.subr.mxu0 0.0
    %2025 = vmatpush1.msra.mxu0 0.0
    %2026 = vmatprep.subr.mxu0 0.0
    %2027 = vmatpush1.msra.mxu0 0.0
    %2028 = vmatprep.subr.mxu0 0.0
    %2029 = vmatpush1.msra.mxu0 0.0
    %2030 = vmatprep.subr.mxu0 0.0
    %2031 = vmatpush1.msra.mxu0 0.0
    %2032 = vmatprep.subr.mxu0 0.0
    %2033 = vmatpush1.msra.mxu0 0.0
    %2034 = vmatprep.subr.mxu0 0.0
    %2035 = vmatpush1.msra.mxu0 0.0
    %2036 = vmatprep.subr.mxu0 0.0
    %2037 = vmatpush1.msra.mxu0 0.0
    %2038 = vmatprep.subr.mxu0 0.0
    %2039 = vmatpush1.msra.mxu0 0.0
    %2040 = vmatprep.subr.mxu0 0.0
    %2041 = vmatpush1.msra.mxu0 0.0
    %2042 = vmatprep.subr.mxu0 0.0
    %2043 = vmatpush1.msra.mxu0 0.0
    %2044 = vmatprep.subr.mxu0 0.0
    %2045 = vmatpush1.msra.mxu0 0.0
    %2046 = vmatprep.subr.mxu0 0.0
    %2047 = vmatpush1.msra.mxu0 0.0
    %2048 = vmatprep.subr.mxu0 0.0
    %2049 = vmatpush1.msra.mxu0 0.0
    %2050 = vmatprep.subr.mxu0 0.0
    %2051 = vmatpush1.msra.mxu0 0.0
    %2052 = vmatprep.subr.mxu0 0.0
    %2053 = vmatpush1.msra.mxu0 0.0
    %2054 = vmatprep.subr.mxu0 0.0
    %2055 = vmatpush1.msra.mxu0 0.0
    %2056 = vmatprep.mubr.f32.mxu0 0.0
    %2057 = vmatmul.mubr.f32.gmra.mrb[0].mxu0 %v1990
    %v2058 = vpop.f32.mrb[0].mxu0
    %v2059 = vadd.f32 %v1985, %v2058
    %v2060 = vpop.f32.mrb[0].mxu0
    %2061 = vdwg.mxu0
    %vm2062 = vcmask 7168
    %2063 = vst.msk [vmem:[%s9] sm:$0xff] %vm2062, %v2059
    // Predicated region
    $region50: #{tpu_custom_call.1} parent=1 // pred_check
      _
    $region51: #{tpu_custom_call.1} parent=1 // pred_check_branch
      %2065 = sbr.rel (0) target = $region53
    $region52: #{tpu_custom_call.1} parent=1 // pred_region
      _
    $region53: #{tpu_custom_call.1} parent=1 // pred_fallthru
      _
    // Predicated region
    $region54: #{tpu_custom_call.1} parent=1 // pred_check
      _
    $region55: #{tpu_custom_call.1} parent=1 // pred_check_branch
      %2067 = sbr.rel (0) target = $region57
    $region56: #{tpu_custom_call.1} parent=1 // pred_region
      _
    $region57: #{tpu_custom_call.1} parent=1 // pred_fallthru
      _
    %2068 = vsyncpa [#allocation4], 1
    %2069 = vsyncpa [#allocation6], 1

</llo_original>
